<compile_context>
chip_gen: v6e
topology: v6e:2x2x1
jax: 0.10.0
libtpu: 0.0.40
codegen_flags: <defaults>
</compile_context>

<pallas_src>
import functools

import jax
import jax.numpy as jnp
from jax import lax
from jax.experimental import pallas as pl
from jax.experimental.pallas import tpu as pltpu


def _mha_kernel(q_ref, k_ref, v_ref,
                wq_ref, bq_ref, wk_ref, bk_ref, wv_ref, bv_ref,
                wo_ref, bo_ref,
                out_ref, attn_ref,
                *, batch, q_len, kv_len, n_head, k_channels, v_channels):
    # q_ref: (B, Lq, Cin)   k_ref/v_ref: (B, Lk, Cin)
    # wq_ref/wk_ref: (Cin, H*Dk)   wv_ref: (Cin, H*Dv)   wo_ref: (H*Dv, Cin)
    # bq_ref/bk_ref: (1, H*Dk)     bv_ref: (1, H*Dv)     bo_ref: (1, Cin)
    # out_ref: (B, Lq, Cin)        attn_ref: (B, H, Lq, Lk)
    B, Lq, Lk = batch, q_len, kv_len
    Dk, Dv = k_channels, v_channels
    Cin = q_ref.shape[-1]

    # Flatten (B, L) into the matmul M dimension -> one wide MXU matmul per
    # projection.  1/sqrt(Dk) is already folded into wq/bq at load time.
    q2 = q_ref[...].reshape(B * Lq, Cin)
    k2 = k_ref[...].reshape(B * Lk, Cin)
    v2 = v_ref[...].reshape(B * Lk, Cin)

    Q = jnp.dot(q2, wq_ref[...], preferred_element_type=jnp.float32) + bq_ref[...]
    K = jnp.dot(k2, wk_ref[...], preferred_element_type=jnp.float32) + bk_ref[...]
    V = jnp.dot(v2, wv_ref[...], preferred_element_type=jnp.float32) + bv_ref[...]

    # Per-(batch, head) scaled-dot-product attention (B, H tiny -> static unroll).
    o_rows = []
    for b in range(B):
        Qb = Q[b * Lq:(b + 1) * Lq]          # (Lq, H*Dk)
        Kb = K[b * Lk:(b + 1) * Lk]          # (Lk, H*Dk)
        Vb = V[b * Lk:(b + 1) * Lk]          # (Lk, H*Dv)
        o_heads = []
        for h in range(n_head):
            qh = Qb[:, h * Dk:(h + 1) * Dk]  # (Lq, Dk)
            kh = Kb[:, h * Dk:(h + 1) * Dk]  # (Lk, Dk)
            vh = Vb[:, h * Dv:(h + 1) * Dv]  # (Lk, Dv)

            # scores: contract Dk of both operands (no explicit XLU transpose)
            s = lax.dot_general(qh, kh, (((1,), (1,)), ((), ())),
                                preferred_element_type=jnp.float32)   # (Lq, Lk)

            # exact softmax in f32 (returned probs must match torch.softmax)
            m = jnp.max(s, axis=-1, keepdims=True)
            e = jnp.exp(s - m)
            p = e / jnp.sum(e, axis=-1, keepdims=True)                # (Lq, Lk)

            attn_ref[b, h] = p.astype(attn_ref.dtype)
            o_heads.append(jnp.dot(p, vh, preferred_element_type=jnp.float32))
        o_rows.append(jnp.concatenate(o_heads, axis=-1))              # (Lq, H*Dv)

    # Fused output projection: one (B*Lq, H*Dv) @ (H*Dv, Cin) matmul.
    o_all = jnp.concatenate(o_rows, axis=0)                           # (B*Lq, H*Dv)
    out = jnp.dot(o_all, wo_ref[...], preferred_element_type=jnp.float32) + bo_ref[...]
    out_ref[...] = out.reshape(B, Lq, Cin).astype(out_ref.dtype)


def prepare_params(params, *, n_head, k_channels, v_channels):
    """One-time, load-time weight prep (NOT on the per-call hot path).

    Converts PyTorch nn.Linear (out, in) layout to matmul-ready slabs and
    folds the 1/sqrt(Dk) attention temperature into Wq / bq.
    """
    del n_head, v_channels  # layout is fully determined by the shapes
    scale = jnp.asarray(1.0 / (k_channels ** 0.5), dtype=params["wq"].dtype)
    return {
        "wq": params["wq"].T * scale,            # (Cin, H*Dk), temperature folded
        "bq": (params["bq"] * scale).reshape(1, -1),
        "wk": params["wk"].T,                    # (Cin, H*Dk)
        "bk": params["bk"].reshape(1, -1),
        "wv": params["wv"].T,                    # (Cin, H*Dv)
        "bv": params["bv"].reshape(1, -1),
        "wo": params["wo"].T,                    # (H*Dv, Cin)
        "bo": params["bo"].reshape(1, -1),
    }


def multi_head_attention(q, k, v, prepared, *, n_head, k_channels, v_channels):
    """q,k,v: (B, L*, Cin). `prepared` comes from prepare_params (one-time).

    Returns (out, attn): (B, Lq, Cin), (B, H, Lq, Lk). Dropout = identity (eval).
    """
    B, Lq, Cin = q.shape
    Lk = k.shape[1]
    H, Dk, Dv = n_head, k_channels, v_channels
    HDk, HDv = H * Dk, H * Dv

    kernel = functools.partial(_mha_kernel, batch=B, q_len=Lq, kv_len=Lk,
                               n_head=H, k_channels=Dk, v_channels=Dv)

    out, attn = pl.pallas_call(
        kernel,
        out_shape=(
            jax.ShapeDtypeStruct((B, Lq, Cin), q.dtype),
            jax.ShapeDtypeStruct((B, H, Lq, Lk), jnp.float32),
        ),
        grid_spec=pltpu.PrefetchScalarGridSpec(
            num_scalar_prefetch=0,
            grid=(1,),                       # single fused step; B folded into block
            in_specs=[
                pl.BlockSpec((B, Lq, Cin), lambda i: (0, 0, 0)),     # q
                pl.BlockSpec((B, Lk, Cin), lambda i: (0, 0, 0)),     # k
                pl.BlockSpec((B, Lk, Cin), lambda i: (0, 0, 0)),     # v
                pl.BlockSpec((Cin, HDk), lambda i: (0, 0)),          # wq
                pl.BlockSpec((1, HDk), lambda i: (0, 0)),            # bq
                pl.BlockSpec((Cin, HDk), lambda i: (0, 0)),          # wk
                pl.BlockSpec((1, HDk), lambda i: (0, 0)),            # bk
                pl.BlockSpec((Cin, HDv), lambda i: (0, 0)),          # wv
                pl.BlockSpec((1, HDv), lambda i: (0, 0)),            # bv
                pl.BlockSpec((HDv, Cin), lambda i: (0, 0)),          # wo
                pl.BlockSpec((1, Cin), lambda i: (0, 0)),            # bo
            ],
            out_specs=[
                pl.BlockSpec((B, Lq, Cin), lambda i: (0, 0, 0)),       # out
                pl.BlockSpec((B, H, Lq, Lk), lambda i: (0, 0, 0, 0)),  # attn
            ],
        ),
        compiler_params=pltpu.CompilerParams(
            dimension_semantics=("arbitrary",)),
    )(q, k, v,
      prepared["wq"], prepared["bq"], prepared["wk"], prepared["bk"],
      prepared["wv"], prepared["bv"], prepared["wo"], prepared["bo"])
    return out, attn


def reference(q, k, v, params, *, n_head, k_channels, v_channels):
    """Pure-JAX reference mirroring the PyTorch forward (eval mode, no mask)."""
    B, Lq, Cin = q.shape
    Lk = k.shape[1]

    def lin(x, w, b):  # PyTorch Linear: x @ W^T + b, W is (out, in)
        return x @ w.T + b

    Q = lin(q, params["wq"], params["bq"]).reshape(B, Lq, n_head, k_channels).transpose(0, 2, 1, 3)
    K = lin(k, params["wk"], params["bk"]).reshape(B, Lk, n_head, k_channels).transpose(0, 2, 1, 3)
    V = lin(v, params["wv"], params["bv"]).reshape(B, Lk, n_head, v_channels).transpose(0, 2, 1, 3)

    attn = jnp.einsum("bhqd,bhkd->bhqk", Q, K) / (k_channels ** 0.5)
    attn = jax.nn.softmax(attn, axis=-1)
    out = jnp.einsum("bhqk,bhkd->bhqd", attn, V)
    out = out.transpose(0, 2, 1, 3).reshape(B, Lq, n_head * v_channels)
    out = lin(out, params["wo"], params["bo"])
    return out, attn


if __name__ == "__main__":
    B = 2
    L = 8            # q_len = k_len = v_len
    Cin = 32         # in_channels
    H = 4            # n_head
    Dk = 8           # k_channels
    Dv = 8           # v_channels

    key = jax.random.PRNGKey(0)
    ks = jax.random.split(key, 11)

    q = jax.random.normal(ks[0], (B, L, Cin), dtype=jnp.float32)
    k = jax.random.normal(ks[1], (B, L, Cin), dtype=jnp.float32)
    v = jax.random.normal(ks[2], (B, L, Cin), dtype=jnp.float32)

    # PyTorch nn.Linear layout: weight (out_features, in_features), bias (out_features,)
    params = {
        "wq": jax.random.normal(ks[3], (H * Dk, Cin), dtype=jnp.float32) * 0.1,
        "bq": jax.random.normal(ks[4], (H * Dk,), dtype=jnp.float32) * 0.1,
        "wk": jax.random.normal(ks[5], (H * Dk, Cin), dtype=jnp.float32) * 0.1,
        "bk": jax.random.normal(ks[6], (H * Dk,), dtype=jnp.float32) * 0.1,
        "wv": jax.random.normal(ks[7], (H * Dv, Cin), dtype=jnp.float32) * 0.1,
        "bv": jax.random.normal(ks[8], (H * Dv,), dtype=jnp.float32) * 0.1,
        "wo": jax.random.normal(ks[9], (Cin, H * Dv), dtype=jnp.float32) * 0.1,
        "bo": jax.random.normal(ks[10], (Cin,), dtype=jnp.float32) * 0.1,
    }

    # One-time weight prep (model-load time), NOT part of the per-call hot path.
    prepared = jax.tree_util.tree_map(jax.block_until_ready,
                                      prepare_params(params, n_head=H,
                                                     k_channels=Dk, v_channels=Dv))

    out, attn = multi_head_attention(q, k, v, prepared,
                                     n_head=H, k_channels=Dk, v_channels=Dv)
    out = jax.block_until_ready(out)
    attn = jax.block_until_ready(attn)

    ref_out, ref_attn = reference(q, k, v, params,
                                  n_head=H, k_channels=Dk, v_channels=Dv)

    assert out.shape == (B, L, Cin), out.shape
    assert attn.shape == (B, H, L, L), attn.shape
    assert jnp.allclose(out, ref_out, atol=1e-4, rtol=1e-4), (out, ref_out)
    assert jnp.allclose(attn, ref_attn, atol=1e-4, rtol=1e-4), (attn, ref_attn)
    print("KERNEL_OK")
</pallas_src>

<mosaic_0001>
module attributes {stable_mosaic.version = 11 : i64} {
  func.func @_mha_kernel(%arg0: i32, %arg1: memref<2x8x32xf32, #tpu.memory_space<vmem>>, %arg2: memref<2x8x32xf32, #tpu.memory_space<vmem>>, %arg3: memref<2x8x32xf32, #tpu.memory_space<vmem>>, %arg4: memref<32x32xf32, #tpu.memory_space<vmem>>, %arg5: memref<1x32xf32, #tpu.memory_space<vmem>>, %arg6: memref<32x32xf32, #tpu.memory_space<vmem>>, %arg7: memref<1x32xf32, #tpu.memory_space<vmem>>, %arg8: memref<32x32xf32, #tpu.memory_space<vmem>>, %arg9: memref<1x32xf32, #tpu.memory_space<vmem>>, %arg10: memref<32x32xf32, #tpu.memory_space<vmem>>, %arg11: memref<1x32xf32, #tpu.memory_space<vmem>>, %arg12: memref<2x8x32xf32, #tpu.memory_space<vmem>>, %arg13: memref<2x4x8x8xf32, #tpu.memory_space<vmem>>) attributes {dimension_semantics = [#tpu.dimension_semantics<arbitrary>], iteration_bounds = array<i64: 1>, scalar_prefetch = 0 : i64, scratch_operands = 0 : i64, tpu.core_type = #tpu.core_type<tc>, window_params = [{pipeline_mode = #tpu.pipeline_mode<synchronous>, transform_indices = @transform_0, window_bounds = array<i64: 2, 8, 32>}, {pipeline_mode = #tpu.pipeline_mode<synchronous>, transform_indices = @transform_1, window_bounds = array<i64: 2, 8, 32>}, {pipeline_mode = #tpu.pipeline_mode<synchronous>, transform_indices = @transform_2, window_bounds = array<i64: 2, 8, 32>}, {pipeline_mode = #tpu.pipeline_mode<synchronous>, transform_indices = @transform_3, window_bounds = array<i64: 32, 32>}, {pipeline_mode = #tpu.pipeline_mode<synchronous>, transform_indices = @transform_4, window_bounds = array<i64: 1, 32>}, {pipeline_mode = #tpu.pipeline_mode<synchronous>, transform_indices = @transform_5, window_bounds = array<i64: 32, 32>}, {pipeline_mode = #tpu.pipeline_mode<synchronous>, transform_indices = @transform_6, window_bounds = array<i64: 1, 32>}, {pipeline_mode = #tpu.pipeline_mode<synchronous>, transform_indices = @transform_7, window_bounds = array<i64: 32, 32>}, {pipeline_mode = #tpu.pipeline_mode<synchronous>, transform_indices = @transform_8, window_bounds = array<i64: 1, 32>}, {pipeline_mode = #tpu.pipeline_mode<synchronous>, transform_indices = @transform_9, window_bounds = array<i64: 32, 32>}, {pipeline_mode = #tpu.pipeline_mode<synchronous>, transform_indices = @transform_10, window_bounds = array<i64: 1, 32>}, {pipeline_mode = #tpu.pipeline_mode<synchronous>, transform_indices = @transform_11, window_bounds = array<i64: 2, 8, 32>}, {pipeline_mode = #tpu.pipeline_mode<synchronous>, transform_indices = @transform_12, window_bounds = array<i64: 2, 4, 8, 8>}]} {
    %c0 = arith.constant 0 : index
    %c0_0 = arith.constant 0 : index
    %c0_1 = arith.constant 0 : index
    %0 = vector.load %arg1[%c0, %c0_0, %c0_1] : memref<2x8x32xf32, #tpu.memory_space<vmem>>, vector<2x8x32xf32>
    %1 = vector.shape_cast %0 : vector<2x8x32xf32> to vector<16x32xf32>
    %c0_2 = arith.constant 0 : index
    %c0_3 = arith.constant 0 : index
    %c0_4 = arith.constant 0 : index
    %2 = vector.load %arg2[%c0_2, %c0_3, %c0_4] : memref<2x8x32xf32, #tpu.memory_space<vmem>>, vector<2x8x32xf32>
    %3 = vector.shape_cast %2 : vector<2x8x32xf32> to vector<16x32xf32>
    %c0_5 = arith.constant 0 : index
    %c0_6 = arith.constant 0 : index
    %c0_7 = arith.constant 0 : index
    %4 = vector.load %arg3[%c0_5, %c0_6, %c0_7] : memref<2x8x32xf32, #tpu.memory_space<vmem>>, vector<2x8x32xf32>
    %5 = vector.shape_cast %4 : vector<2x8x32xf32> to vector<16x32xf32>
    %c0_8 = arith.constant 0 : index
    %c0_9 = arith.constant 0 : index
    %6 = vector.load %arg4[%c0_8, %c0_9] : memref<32x32xf32, #tpu.memory_space<vmem>>, vector<32x32xf32>
    %cst = arith.constant dense<0.000000e+00> : vector<16x32xf32>
    %7 = tpu.matmul %1, %6, %cst {dimension_numbers = #tpu.dot_dimension_numbers<[1], [0], [0], [1], [0, 0, 1, 1], [], []>} : vector<16x32xf32>, vector<32x32xf32>, vector<16x32xf32> -> vector<16x32xf32>
    %c0_10 = arith.constant 0 : index
    %c0_11 = arith.constant 0 : index
    %8 = vector.load %arg5[%c0_10, %c0_11] : memref<1x32xf32, #tpu.memory_space<vmem>>, vector<1x32xf32>
    %9 = vector.broadcast %8 : vector<1x32xf32> to vector<16x32xf32>
    %10 = arith.addf %7, %9 : vector<16x32xf32>
    %c0_12 = arith.constant 0 : index
    %c0_13 = arith.constant 0 : index
    %11 = vector.load %arg6[%c0_12, %c0_13] : memref<32x32xf32, #tpu.memory_space<vmem>>, vector<32x32xf32>
    %cst_14 = arith.constant dense<0.000000e+00> : vector<16x32xf32>
    %12 = tpu.matmul %3, %11, %cst_14 {dimension_numbers = #tpu.dot_dimension_numbers<[1], [0], [0], [1], [0, 0, 1, 1], [], []>} : vector<16x32xf32>, vector<32x32xf32>, vector<16x32xf32> -> vector<16x32xf32>
    %c0_15 = arith.constant 0 : index
    %c0_16 = arith.constant 0 : index
    %13 = vector.load %arg7[%c0_15, %c0_16] : memref<1x32xf32, #tpu.memory_space<vmem>>, vector<1x32xf32>
    %14 = vector.broadcast %13 : vector<1x32xf32> to vector<16x32xf32>
    %15 = arith.addf %12, %14 : vector<16x32xf32>
    %c0_17 = arith.constant 0 : index
    %c0_18 = arith.constant 0 : index
    %16 = vector.load %arg8[%c0_17, %c0_18] : memref<32x32xf32, #tpu.memory_space<vmem>>, vector<32x32xf32>
    %cst_19 = arith.constant dense<0.000000e+00> : vector<16x32xf32>
    %17 = tpu.matmul %5, %16, %cst_19 {dimension_numbers = #tpu.dot_dimension_numbers<[1], [0], [0], [1], [0, 0, 1, 1], [], []>} : vector<16x32xf32>, vector<32x32xf32>, vector<16x32xf32> -> vector<16x32xf32>
    %c0_20 = arith.constant 0 : index
    %c0_21 = arith.constant 0 : index
    %18 = vector.load %arg9[%c0_20, %c0_21] : memref<1x32xf32, #tpu.memory_space<vmem>>, vector<1x32xf32>
    %19 = vector.broadcast %18 : vector<1x32xf32> to vector<16x32xf32>
    %20 = arith.addf %17, %19 : vector<16x32xf32>
    %21 = vector.extract_strided_slice %10 {offsets = [0, 0], sizes = [8, 32], strides = [1, 1]} : vector<16x32xf32> to vector<8x32xf32>
    %22 = vector.extract_strided_slice %15 {offsets = [0, 0], sizes = [8, 32], strides = [1, 1]} : vector<16x32xf32> to vector<8x32xf32>
    %23 = vector.extract_strided_slice %20 {offsets = [0, 0], sizes = [8, 32], strides = [1, 1]} : vector<16x32xf32> to vector<8x32xf32>
    %24 = vector.extract_strided_slice %21 {offsets = [0, 0], sizes = [8, 8], strides = [1, 1]} : vector<8x32xf32> to vector<8x8xf32>
    %25 = vector.extract_strided_slice %22 {offsets = [0, 0], sizes = [8, 8], strides = [1, 1]} : vector<8x32xf32> to vector<8x8xf32>
    %26 = vector.extract_strided_slice %23 {offsets = [0, 0], sizes = [8, 8], strides = [1, 1]} : vector<8x32xf32> to vector<8x8xf32>
    %cst_22 = arith.constant dense<0.000000e+00> : vector<8x8xf32>
    %27 = tpu.matmul %24, %25, %cst_22 {dimension_numbers = #tpu.dot_dimension_numbers<[1], [1], [0], [0], [0, 0, 1, 0], [], []>} : vector<8x8xf32>, vector<8x8xf32>, vector<8x8xf32> -> vector<8x8xf32>
    %cst_23 = arith.constant dense<0xFF800000> : vector<8xf32>
    %28 = vector.multi_reduction <maximumf>, %27, %cst_23 [1] : vector<8x8xf32> to vector<8xf32>
    %29 = vector.shape_cast %28 : vector<8xf32> to vector<8x1xf32>
    %30 = vector.broadcast %29 : vector<8x1xf32> to vector<8x8xf32>
    %31 = arith.subf %27, %30 : vector<8x8xf32>
    %32 = math.exp %31 : vector<8x8xf32>
    %cst_24 = arith.constant dense<0.000000e+00> : vector<8xf32>
    %33 = vector.multi_reduction <add>, %32, %cst_24 [1] : vector<8x8xf32> to vector<8xf32>
    %34 = vector.shape_cast %33 : vector<8xf32> to vector<8x1xf32>
    %35 = vector.broadcast %34 : vector<8x1xf32> to vector<8x8xf32>
    %36 = arith.divf %32, %35 : vector<8x8xf32>
    %c0_25 = arith.constant 0 : index
    %c0_26 = arith.constant 0 : index
    %c0_27 = arith.constant 0 : index
    %c0_28 = arith.constant 0 : index
    %37 = vector.load %arg13[%c0_25, %c0_26, %c0_27, %c0_28] : memref<2x4x8x8xf32, #tpu.memory_space<vmem>>, vector<1x1x8x8xf32>
    %38 = vector.shape_cast %37 : vector<1x1x8x8xf32> to vector<8x8xf32>
    %39 = vector.shape_cast %36 : vector<8x8xf32> to vector<1x1x8x8xf32>
    tpu.vector_store %arg13[%c0_25, %c0_26, %c0_27, %c0_28], %39 {strides = array<i32>} : memref<2x4x8x8xf32, #tpu.memory_space<vmem>>, vector<1x1x8x8xf32>,
    %cst_29 = arith.constant dense<0.000000e+00> : vector<8x8xf32>
    %40 = tpu.matmul %36, %26, %cst_29 {dimension_numbers = #tpu.dot_dimension_numbers<[1], [0], [0], [1], [0, 0, 1, 1], [], []>} : vector<8x8xf32>, vector<8x8xf32>, vector<8x8xf32> -> vector<8x8xf32>
    %41 = vector.extract_strided_slice %21 {offsets = [0, 8], sizes = [8, 8], strides = [1, 1]} : vector<8x32xf32> to vector<8x8xf32>
    %42 = vector.extract_strided_slice %22 {offsets = [0, 8], sizes = [8, 8], strides = [1, 1]} : vector<8x32xf32> to vector<8x8xf32>
    %43 = vector.extract_strided_slice %23 {offsets = [0, 8], sizes = [8, 8], strides = [1, 1]} : vector<8x32xf32> to vector<8x8xf32>
    %cst_30 = arith.constant dense<0.000000e+00> : vector<8x8xf32>
    %44 = tpu.matmul %41, %42, %cst_30 {dimension_numbers = #tpu.dot_dimension_numbers<[1], [1], [0], [0], [0, 0, 1, 0], [], []>} : vector<8x8xf32>, vector<8x8xf32>, vector<8x8xf32> -> vector<8x8xf32>
    %cst_31 = arith.constant dense<0xFF800000> : vector<8xf32>
    %45 = vector.multi_reduction <maximumf>, %44, %cst_31 [1] : vector<8x8xf32> to vector<8xf32>
    %46 = vector.shape_cast %45 : vector<8xf32> to vector<8x1xf32>
    %47 = vector.broadcast %46 : vector<8x1xf32> to vector<8x8xf32>
    %48 = arith.subf %44, %47 : vector<8x8xf32>
    %49 = math.exp %48 : vector<8x8xf32>
    %cst_32 = arith.constant dense<0.000000e+00> : vector<8xf32>
    %50 = vector.multi_reduction <add>, %49, %cst_32 [1] : vector<8x8xf32> to vector<8xf32>
    %51 = vector.shape_cast %50 : vector<8xf32> to vector<8x1xf32>
    %52 = vector.broadcast %51 : vector<8x1xf32> to vector<8x8xf32>
    %53 = arith.divf %49, %52 : vector<8x8xf32>
    %c0_33 = arith.constant 0 : index
    %c1 = arith.constant 1 : index
    %c0_34 = arith.constant 0 : index
    %c0_35 = arith.constant 0 : index
    %54 = vector.load %arg13[%c0_33, %c1, %c0_34, %c0_35] : memref<2x4x8x8xf32, #tpu.memory_space<vmem>>, vector<1x1x8x8xf32>
    %55 = vector.shape_cast %54 : vector<1x1x8x8xf32> to vector<8x8xf32>
    %56 = vector.shape_cast %53 : vector<8x8xf32> to vector<1x1x8x8xf32>
    tpu.vector_store %arg13[%c0_33, %c1, %c0_34, %c0_35], %56 {strides = array<i32>} : memref<2x4x8x8xf32, #tpu.memory_space<vmem>>, vector<1x1x8x8xf32>,
    %cst_36 = arith.constant dense<0.000000e+00> : vector<8x8xf32>
    %57 = tpu.matmul %53, %43, %cst_36 {dimension_numbers = #tpu.dot_dimension_numbers<[1], [0], [0], [1], [0, 0, 1, 1], [], []>} : vector<8x8xf32>, vector<8x8xf32>, vector<8x8xf32> -> vector<8x8xf32>
    %58 = vector.extract_strided_slice %21 {offsets = [0, 16], sizes = [8, 8], strides = [1, 1]} : vector<8x32xf32> to vector<8x8xf32>
    %59 = vector.extract_strided_slice %22 {offsets = [0, 16], sizes = [8, 8], strides = [1, 1]} : vector<8x32xf32> to vector<8x8xf32>
    %60 = vector.extract_strided_slice %23 {offsets = [0, 16], sizes = [8, 8], strides = [1, 1]} : vector<8x32xf32> to vector<8x8xf32>
    %cst_37 = arith.constant dense<0.000000e+00> : vector<8x8xf32>
    %61 = tpu.matmul %58, %59, %cst_37 {dimension_numbers = #tpu.dot_dimension_numbers<[1], [1], [0], [0], [0, 0, 1, 0], [], []>} : vector<8x8xf32>, vector<8x8xf32>, vector<8x8xf32> -> vector<8x8xf32>
    %cst_38 = arith.constant dense<0xFF800000> : vector<8xf32>
    %62 = vector.multi_reduction <maximumf>, %61, %cst_38 [1] : vector<8x8xf32> to vector<8xf32>
    %63 = vector.shape_cast %62 : vector<8xf32> to vector<8x1xf32>
    %64 = vector.broadcast %63 : vector<8x1xf32> to vector<8x8xf32>
    %65 = arith.subf %61, %64 : vector<8x8xf32>
    %66 = math.exp %65 : vector<8x8xf32>
    %cst_39 = arith.constant dense<0.000000e+00> : vector<8xf32>
    %67 = vector.multi_reduction <add>, %66, %cst_39 [1] : vector<8x8xf32> to vector<8xf32>
    %68 = vector.shape_cast %67 : vector<8xf32> to vector<8x1xf32>
    %69 = vector.broadcast %68 : vector<8x1xf32> to vector<8x8xf32>
    %70 = arith.divf %66, %69 : vector<8x8xf32>
    %c0_40 = arith.constant 0 : index
    %c2 = arith.constant 2 : index
    %c0_41 = arith.constant 0 : index
    %c0_42 = arith.constant 0 : index
    %71 = vector.load %arg13[%c0_40, %c2, %c0_41, %c0_42] : memref<2x4x8x8xf32, #tpu.memory_space<vmem>>, vector<1x1x8x8xf32>
    %72 = vector.shape_cast %71 : vector<1x1x8x8xf32> to vector<8x8xf32>
    %73 = vector.shape_cast %70 : vector<8x8xf32> to vector<1x1x8x8xf32>
    tpu.vector_store %arg13[%c0_40, %c2, %c0_41, %c0_42], %73 {strides = array<i32>} : memref<2x4x8x8xf32, #tpu.memory_space<vmem>>, vector<1x1x8x8xf32>,
    %cst_43 = arith.constant dense<0.000000e+00> : vector<8x8xf32>
    %74 = tpu.matmul %70, %60, %cst_43 {dimension_numbers = #tpu.dot_dimension_numbers<[1], [0], [0], [1], [0, 0, 1, 1], [], []>} : vector<8x8xf32>, vector<8x8xf32>, vector<8x8xf32> -> vector<8x8xf32>
    %75 = vector.extract_strided_slice %21 {offsets = [0, 24], sizes = [8, 8], strides = [1, 1]} : vector<8x32xf32> to vector<8x8xf32>
    %76 = vector.extract_strided_slice %22 {offsets = [0, 24], sizes = [8, 8], strides = [1, 1]} : vector<8x32xf32> to vector<8x8xf32>
    %77 = vector.extract_strided_slice %23 {offsets = [0, 24], sizes = [8, 8], strides = [1, 1]} : vector<8x32xf32> to vector<8x8xf32>
    %cst_44 = arith.constant dense<0.000000e+00> : vector<8x8xf32>
    %78 = tpu.matmul %75, %76, %cst_44 {dimension_numbers = #tpu.dot_dimension_numbers<[1], [1], [0], [0], [0, 0, 1, 0], [], []>} : vector<8x8xf32>, vector<8x8xf32>, vector<8x8xf32> -> vector<8x8xf32>
    %cst_45 = arith.constant dense<0xFF800000> : vector<8xf32>
    %79 = vector.multi_reduction <maximumf>, %78, %cst_45 [1] : vector<8x8xf32> to vector<8xf32>
    %80 = vector.shape_cast %79 : vector<8xf32> to vector<8x1xf32>
    %81 = vector.broadcast %80 : vector<8x1xf32> to vector<8x8xf32>
    %82 = arith.subf %78, %81 : vector<8x8xf32>
    %83 = math.exp %82 : vector<8x8xf32>
    %cst_46 = arith.constant dense<0.000000e+00> : vector<8xf32>
    %84 = vector.multi_reduction <add>, %83, %cst_46 [1] : vector<8x8xf32> to vector<8xf32>
    %85 = vector.shape_cast %84 : vector<8xf32> to vector<8x1xf32>
    %86 = vector.broadcast %85 : vector<8x1xf32> to vector<8x8xf32>
    %87 = arith.divf %83, %86 : vector<8x8xf32>
    %c0_47 = arith.constant 0 : index
    %c3 = arith.constant 3 : index
    %c0_48 = arith.constant 0 : index
    %c0_49 = arith.constant 0 : index
    %88 = vector.load %arg13[%c0_47, %c3, %c0_48, %c0_49] : memref<2x4x8x8xf32, #tpu.memory_space<vmem>>, vector<1x1x8x8xf32>
    %89 = vector.shape_cast %88 : vector<1x1x8x8xf32> to vector<8x8xf32>
    %90 = vector.shape_cast %87 : vector<8x8xf32> to vector<1x1x8x8xf32>
    tpu.vector_store %arg13[%c0_47, %c3, %c0_48, %c0_49], %90 {strides = array<i32>} : memref<2x4x8x8xf32, #tpu.memory_space<vmem>>, vector<1x1x8x8xf32>,
    %cst_50 = arith.constant dense<0.000000e+00> : vector<8x8xf32>
    %91 = tpu.matmul %87, %77, %cst_50 {dimension_numbers = #tpu.dot_dimension_numbers<[1], [0], [0], [1], [0, 0, 1, 1], [], []>} : vector<8x8xf32>, vector<8x8xf32>, vector<8x8xf32> -> vector<8x8xf32>
    %92 = tpu.concatenate %40, %57, %74, %91 in 1 : vector<8x8xf32>, vector<8x8xf32>, vector<8x8xf32>, vector<8x8xf32> -> vector<8x32xf32>
    %93 = vector.extract_strided_slice %10 {offsets = [8, 0], sizes = [8, 32], strides = [1, 1]} : vector<16x32xf32> to vector<8x32xf32>
    %94 = vector.extract_strided_slice %15 {offsets = [8, 0], sizes = [8, 32], strides = [1, 1]} : vector<16x32xf32> to vector<8x32xf32>
    %95 = vector.extract_strided_slice %20 {offsets = [8, 0], sizes = [8, 32], strides = [1, 1]} : vector<16x32xf32> to vector<8x32xf32>
    %96 = vector.extract_strided_slice %93 {offsets = [0, 0], sizes = [8, 8], strides = [1, 1]} : vector<8x32xf32> to vector<8x8xf32>
    %97 = vector.extract_strided_slice %94 {offsets = [0, 0], sizes = [8, 8], strides = [1, 1]} : vector<8x32xf32> to vector<8x8xf32>
    %98 = vector.extract_strided_slice %95 {offsets = [0, 0], sizes = [8, 8], strides = [1, 1]} : vector<8x32xf32> to vector<8x8xf32>
    %cst_51 = arith.constant dense<0.000000e+00> : vector<8x8xf32>
    %99 = tpu.matmul %96, %97, %cst_51 {dimension_numbers = #tpu.dot_dimension_numbers<[1], [1], [0], [0], [0, 0, 1, 0], [], []>} : vector<8x8xf32>, vector<8x8xf32>, vector<8x8xf32> -> vector<8x8xf32>
    %cst_52 = arith.constant dense<0xFF800000> : vector<8xf32>
    %100 = vector.multi_reduction <maximumf>, %99, %cst_52 [1] : vector<8x8xf32> to vector<8xf32>
    %101 = vector.shape_cast %100 : vector<8xf32> to vector<8x1xf32>
    %102 = vector.broadcast %101 : vector<8x1xf32> to vector<8x8xf32>
    %103 = arith.subf %99, %102 : vector<8x8xf32>
    %104 = math.exp %103 : vector<8x8xf32>
    %cst_53 = arith.constant dense<0.000000e+00> : vector<8xf32>
    %105 = vector.multi_reduction <add>, %104, %cst_53 [1] : vector<8x8xf32> to vector<8xf32>
    %106 = vector.shape_cast %105 : vector<8xf32> to vector<8x1xf32>
    %107 = vector.broadcast %106 : vector<8x1xf32> to vector<8x8xf32>
    %108 = arith.divf %104, %107 : vector<8x8xf32>
    %c1_54 = arith.constant 1 : index
    %c0_55 = arith.constant 0 : index
    %c0_56 = arith.constant 0 : index
    %c0_57 = arith.constant 0 : index
    %109 = vector.load %arg13[%c1_54, %c0_55, %c0_56, %c0_57] : memref<2x4x8x8xf32, #tpu.memory_space<vmem>>, vector<1x1x8x8xf32>
    %110 = vector.shape_cast %109 : vector<1x1x8x8xf32> to vector<8x8xf32>
    %111 = vector.shape_cast %108 : vector<8x8xf32> to vector<1x1x8x8xf32>
    tpu.vector_store %arg13[%c1_54, %c0_55, %c0_56, %c0_57], %111 {strides = array<i32>} : memref<2x4x8x8xf32, #tpu.memory_space<vmem>>, vector<1x1x8x8xf32>,
    %cst_58 = arith.constant dense<0.000000e+00> : vector<8x8xf32>
    %112 = tpu.matmul %108, %98, %cst_58 {dimension_numbers = #tpu.dot_dimension_numbers<[1], [0], [0], [1], [0, 0, 1, 1], [], []>} : vector<8x8xf32>, vector<8x8xf32>, vector<8x8xf32> -> vector<8x8xf32>
    %113 = vector.extract_strided_slice %93 {offsets = [0, 8], sizes = [8, 8], strides = [1, 1]} : vector<8x32xf32> to vector<8x8xf32>
    %114 = vector.extract_strided_slice %94 {offsets = [0, 8], sizes = [8, 8], strides = [1, 1]} : vector<8x32xf32> to vector<8x8xf32>
    %115 = vector.extract_strided_slice %95 {offsets = [0, 8], sizes = [8, 8], strides = [1, 1]} : vector<8x32xf32> to vector<8x8xf32>
    %cst_59 = arith.constant dense<0.000000e+00> : vector<8x8xf32>
    %116 = tpu.matmul %113, %114, %cst_59 {dimension_numbers = #tpu.dot_dimension_numbers<[1], [1], [0], [0], [0, 0, 1, 0], [], []>} : vector<8x8xf32>, vector<8x8xf32>, vector<8x8xf32> -> vector<8x8xf32>
    %cst_60 = arith.constant dense<0xFF800000> : vector<8xf32>
    %117 = vector.multi_reduction <maximumf>, %116, %cst_60 [1] : vector<8x8xf32> to vector<8xf32>
    %118 = vector.shape_cast %117 : vector<8xf32> to vector<8x1xf32>
    %119 = vector.broadcast %118 : vector<8x1xf32> to vector<8x8xf32>
    %120 = arith.subf %116, %119 : vector<8x8xf32>
    %121 = math.exp %120 : vector<8x8xf32>
    %cst_61 = arith.constant dense<0.000000e+00> : vector<8xf32>
    %122 = vector.multi_reduction <add>, %121, %cst_61 [1] : vector<8x8xf32> to vector<8xf32>
    %123 = vector.shape_cast %122 : vector<8xf32> to vector<8x1xf32>
    %124 = vector.broadcast %123 : vector<8x1xf32> to vector<8x8xf32>
    %125 = arith.divf %121, %124 : vector<8x8xf32>
    %c1_62 = arith.constant 1 : index
    %c1_63 = arith.constant 1 : index
    %c0_64 = arith.constant 0 : index
    %c0_65 = arith.constant 0 : index
    %126 = vector.load %arg13[%c1_62, %c1_63, %c0_64, %c0_65] : memref<2x4x8x8xf32, #tpu.memory_space<vmem>>, vector<1x1x8x8xf32>
    %127 = vector.shape_cast %126 : vector<1x1x8x8xf32> to vector<8x8xf32>
    %128 = vector.shape_cast %125 : vector<8x8xf32> to vector<1x1x8x8xf32>
    tpu.vector_store %arg13[%c1_62, %c1_63, %c0_64, %c0_65], %128 {strides = array<i32>} : memref<2x4x8x8xf32, #tpu.memory_space<vmem>>, vector<1x1x8x8xf32>,
    %cst_66 = arith.constant dense<0.000000e+00> : vector<8x8xf32>
    %129 = tpu.matmul %125, %115, %cst_66 {dimension_numbers = #tpu.dot_dimension_numbers<[1], [0], [0], [1], [0, 0, 1, 1], [], []>} : vector<8x8xf32>, vector<8x8xf32>, vector<8x8xf32> -> vector<8x8xf32>
    %130 = vector.extract_strided_slice %93 {offsets = [0, 16], sizes = [8, 8], strides = [1, 1]} : vector<8x32xf32> to vector<8x8xf32>
    %131 = vector.extract_strided_slice %94 {offsets = [0, 16], sizes = [8, 8], strides = [1, 1]} : vector<8x32xf32> to vector<8x8xf32>
    %132 = vector.extract_strided_slice %95 {offsets = [0, 16], sizes = [8, 8], strides = [1, 1]} : vector<8x32xf32> to vector<8x8xf32>
    %cst_67 = arith.constant dense<0.000000e+00> : vector<8x8xf32>
    %133 = tpu.matmul %130, %131, %cst_67 {dimension_numbers = #tpu.dot_dimension_numbers<[1], [1], [0], [0], [0, 0, 1, 0], [], []>} : vector<8x8xf32>, vector<8x8xf32>, vector<8x8xf32> -> vector<8x8xf32>
    %cst_68 = arith.constant dense<0xFF800000> : vector<8xf32>
    %134 = vector.multi_reduction <maximumf>, %133, %cst_68 [1] : vector<8x8xf32> to vector<8xf32>
    %135 = vector.shape_cast %134 : vector<8xf32> to vector<8x1xf32>
    %136 = vector.broadcast %135 : vector<8x1xf32> to vector<8x8xf32>
    %137 = arith.subf %133, %136 : vector<8x8xf32>
    %138 = math.exp %137 : vector<8x8xf32>
    %cst_69 = arith.constant dense<0.000000e+00> : vector<8xf32>
    %139 = vector.multi_reduction <add>, %138, %cst_69 [1] : vector<8x8xf32> to vector<8xf32>
    %140 = vector.shape_cast %139 : vector<8xf32> to vector<8x1xf32>
    %141 = vector.broadcast %140 : vector<8x1xf32> to vector<8x8xf32>
    %142 = arith.divf %138, %141 : vector<8x8xf32>
    %c1_70 = arith.constant 1 : index
    %c2_71 = arith.constant 2 : index
    %c0_72 = arith.constant 0 : index
    %c0_73 = arith.constant 0 : index
    %143 = vector.load %arg13[%c1_70, %c2_71, %c0_72, %c0_73] : memref<2x4x8x8xf32, #tpu.memory_space<vmem>>, vector<1x1x8x8xf32>
    %144 = vector.shape_cast %143 : vector<1x1x8x8xf32> to vector<8x8xf32>
    %145 = vector.shape_cast %142 : vector<8x8xf32> to vector<1x1x8x8xf32>
    tpu.vector_store %arg13[%c1_70, %c2_71, %c0_72, %c0_73], %145 {strides = array<i32>} : memref<2x4x8x8xf32, #tpu.memory_space<vmem>>, vector<1x1x8x8xf32>,
    %cst_74 = arith.constant dense<0.000000e+00> : vector<8x8xf32>
    %146 = tpu.matmul %142, %132, %cst_74 {dimension_numbers = #tpu.dot_dimension_numbers<[1], [0], [0], [1], [0, 0, 1, 1], [], []>} : vector<8x8xf32>, vector<8x8xf32>, vector<8x8xf32> -> vector<8x8xf32>
    %147 = vector.extract_strided_slice %93 {offsets = [0, 24], sizes = [8, 8], strides = [1, 1]} : vector<8x32xf32> to vector<8x8xf32>
    %148 = vector.extract_strided_slice %94 {offsets = [0, 24], sizes = [8, 8], strides = [1, 1]} : vector<8x32xf32> to vector<8x8xf32>
    %149 = vector.extract_strided_slice %95 {offsets = [0, 24], sizes = [8, 8], strides = [1, 1]} : vector<8x32xf32> to vector<8x8xf32>
    %cst_75 = arith.constant dense<0.000000e+00> : vector<8x8xf32>
    %150 = tpu.matmul %147, %148, %cst_75 {dimension_numbers = #tpu.dot_dimension_numbers<[1], [1], [0], [0], [0, 0, 1, 0], [], []>} : vector<8x8xf32>, vector<8x8xf32>, vector<8x8xf32> -> vector<8x8xf32>
    %cst_76 = arith.constant dense<0xFF800000> : vector<8xf32>
    %151 = vector.multi_reduction <maximumf>, %150, %cst_76 [1] : vector<8x8xf32> to vector<8xf32>
    %152 = vector.shape_cast %151 : vector<8xf32> to vector<8x1xf32>
    %153 = vector.broadcast %152 : vector<8x1xf32> to vector<8x8xf32>
    %154 = arith.subf %150, %153 : vector<8x8xf32>
    %155 = math.exp %154 : vector<8x8xf32>
    %cst_77 = arith.constant dense<0.000000e+00> : vector<8xf32>
    %156 = vector.multi_reduction <add>, %155, %cst_77 [1] : vector<8x8xf32> to vector<8xf32>
    %157 = vector.shape_cast %156 : vector<8xf32> to vector<8x1xf32>
    %158 = vector.broadcast %157 : vector<8x1xf32> to vector<8x8xf32>
    %159 = arith.divf %155, %158 : vector<8x8xf32>
    %c1_78 = arith.constant 1 : index
    %c3_79 = arith.constant 3 : index
    %c0_80 = arith.constant 0 : index
    %c0_81 = arith.constant 0 : index
    %160 = vector.load %arg13[%c1_78, %c3_79, %c0_80, %c0_81] : memref<2x4x8x8xf32, #tpu.memory_space<vmem>>, vector<1x1x8x8xf32>
    %161 = vector.shape_cast %160 : vector<1x1x8x8xf32> to vector<8x8xf32>
    %162 = vector.shape_cast %159 : vector<8x8xf32> to vector<1x1x8x8xf32>
    tpu.vector_store %arg13[%c1_78, %c3_79, %c0_80, %c0_81], %162 {strides = array<i32>} : memref<2x4x8x8xf32, #tpu.memory_space<vmem>>, vector<1x1x8x8xf32>,
    %cst_82 = arith.constant dense<0.000000e+00> : vector<8x8xf32>
    %163 = tpu.matmul %159, %149, %cst_82 {dimension_numbers = #tpu.dot_dimension_numbers<[1], [0], [0], [1], [0, 0, 1, 1], [], []>} : vector<8x8xf32>, vector<8x8xf32>, vector<8x8xf32> -> vector<8x8xf32>
    %164 = tpu.concatenate %112, %129, %146, %163 in 1 : vector<8x8xf32>, vector<8x8xf32>, vector<8x8xf32>, vector<8x8xf32> -> vector<8x32xf32>
    %165 = tpu.concatenate %92, %164 in 0 : vector<8x32xf32>, vector<8x32xf32> -> vector<16x32xf32>
    %c0_83 = arith.constant 0 : index
    %c0_84 = arith.constant 0 : index
    %166 = vector.load %arg10[%c0_83, %c0_84] : memref<32x32xf32, #tpu.memory_space<vmem>>, vector<32x32xf32>
    %cst_85 = arith.constant dense<0.000000e+00> : vector<16x32xf32>
    %167 = tpu.matmul %165, %166, %cst_85 {dimension_numbers = #tpu.dot_dimension_numbers<[1], [0], [0], [1], [0, 0, 1, 1], [], []>} : vector<16x32xf32>, vector<32x32xf32>, vector<16x32xf32> -> vector<16x32xf32>
    %c0_86 = arith.constant 0 : index
    %c0_87 = arith.constant 0 : index
    %168 = vector.load %arg11[%c0_86, %c0_87] : memref<1x32xf32, #tpu.memory_space<vmem>>, vector<1x32xf32>
    %169 = vector.broadcast %168 : vector<1x32xf32> to vector<16x32xf32>
    %170 = arith.addf %167, %169 : vector<16x32xf32>
    %171 = vector.shape_cast %170 : vector<16x32xf32> to vector<2x8x32xf32>
    %c0_88 = arith.constant 0 : index
    %c0_89 = arith.constant 0 : index
    %c0_90 = arith.constant 0 : index
    %172 = vector.load %arg12[%c0_88, %c0_89, %c0_90] : memref<2x8x32xf32, #tpu.memory_space<vmem>>, vector<2x8x32xf32>
    tpu.vector_store %arg12[%c0_88, %c0_89, %c0_90], %171 {strides = array<i32>} : memref<2x8x32xf32, #tpu.memory_space<vmem>>, vector<2x8x32xf32>,
    return
  }
  func.func @transform_0(%arg0: i32) -> (i32, i32, i32) {
    %c0_i32 = arith.constant 0 : i32
    %c0_i32_0 = arith.constant 0 : i32
    %c0_i32_1 = arith.constant 0 : i32
    %c0_i32_2 = arith.constant 0 : i32
    return %c0_i32, %c0_i32_0, %c0_i32_1 : i32, i32, i32
  }
  func.func @transform_1(%arg0: i32) -> (i32, i32, i32) {
    %c0_i32 = arith.constant 0 : i32
    %c0_i32_0 = arith.constant 0 : i32
    %c0_i32_1 = arith.constant 0 : i32
    %c0_i32_2 = arith.constant 0 : i32
    return %c0_i32, %c0_i32_0, %c0_i32_1 : i32, i32, i32
  }
  func.func @transform_2(%arg0: i32) -> (i32, i32, i32) {
    %c0_i32 = arith.constant 0 : i32
    %c0_i32_0 = arith.constant 0 : i32
    %c0_i32_1 = arith.constant 0 : i32
    %c0_i32_2 = arith.constant 0 : i32
    return %c0_i32, %c0_i32_0, %c0_i32_1 : i32, i32, i32
  }
  func.func @transform_3(%arg0: i32) -> (i32, i32) {
    %c0_i32 = arith.constant 0 : i32
    %c0_i32_0 = arith.constant 0 : i32
    %c0_i32_1 = arith.constant 0 : i32
    return %c0_i32, %c0_i32_0 : i32, i32
  }
  func.func @transform_4(%arg0: i32) -> (i32, i32) {
    %c0_i32 = arith.constant 0 : i32
    %c0_i32_0 = arith.constant 0 : i32
    %c0_i32_1 = arith.constant 0 : i32
    return %c0_i32, %c0_i32_0 : i32, i32
  }
  func.func @transform_5(%arg0: i32) -> (i32, i32) {
    %c0_i32 = arith.constant 0 : i32
    %c0_i32_0 = arith.constant 0 : i32
    %c0_i32_1 = arith.constant 0 : i32
    return %c0_i32, %c0_i32_0 : i32, i32
  }
  func.func @transform_6(%arg0: i32) -> (i32, i32) {
    %c0_i32 = arith.constant 0 : i32
    %c0_i32_0 = arith.constant 0 : i32
    %c0_i32_1 = arith.constant 0 : i32
    return %c0_i32, %c0_i32_0 : i32, i32
  }
  func.func @transform_7(%arg0: i32) -> (i32, i32) {
    %c0_i32 = arith.constant 0 : i32
    %c0_i32_0 = arith.constant 0 : i32
    %c0_i32_1 = arith.constant 0 : i32
    return %c0_i32, %c0_i32_0 : i32, i32
  }
  func.func @transform_8(%arg0: i32) -> (i32, i32) {
    %c0_i32 = arith.constant 0 : i32
    %c0_i32_0 = arith.constant 0 : i32
    %c0_i32_1 = arith.constant 0 : i32
    return %c0_i32, %c0_i32_0 : i32, i32
  }
  func.func @transform_9(%arg0: i32) -> (i32, i32) {
    %c0_i32 = arith.constant 0 : i32
    %c0_i32_0 = arith.constant 0 : i32
    %c0_i32_1 = arith.constant 0 : i32
    return %c0_i32, %c0_i32_0 : i32, i32
  }
  func.func @transform_10(%arg0: i32) -> (i32, i32) {
    %c0_i32 = arith.constant 0 : i32
    %c0_i32_0 = arith.constant 0 : i32
    %c0_i32_1 = arith.constant 0 : i32
    return %c0_i32, %c0_i32_0 : i32, i32
  }
  func.func @transform_11(%arg0: i32) -> (i32, i32, i32) {
    %c0_i32 = arith.constant 0 : i32
    %c0_i32_0 = arith.constant 0 : i32
    %c0_i32_1 = arith.constant 0 : i32
    %c0_i32_2 = arith.constant 0 : i32
    return %c0_i32, %c0_i32_0, %c0_i32_1 : i32, i32, i32
  }
  func.func @transform_12(%arg0: i32) -> (i32, i32, i32, i32) {
    %c0_i32 = arith.constant 0 : i32
    %c0_i32_0 = arith.constant 0 : i32
    %c0_i32_1 = arith.constant 0 : i32
    %c0_i32_2 = arith.constant 0 : i32
    %c0_i32_3 = arith.constant 0 : i32
    return %c0_i32, %c0_i32_0, %c0_i32_1, %c0_i32_2 : i32, i32, i32, i32
  }
}

</mosaic_0001>

<llo_original>
// kernel: tpu_custom_call.1
$region0: #{tpu_custom_call.1}
  #allocation0 [shape = 'u32[]', space=smem, size = 0x4, offset = 0x4, fixed_abs, tag = 'smem constant byte address 0x4 - core index']
  #allocation1 [shape = 'u32[144,128]{1,0:T(1,128)}', space=vmem, size = 0x12000, scoped, tag = 'internal scratch']
  %s0 = inlined_call_operand.hbm [shape: f32[2,8,32], index: 0, kind: input, shape index: {}]
  %s1 = inlined_call_operand.hbm [shape: f32[2,8,32], index: 1, kind: input, shape index: {}]
  %s2 = inlined_call_operand.hbm [shape: f32[2,8,32], index: 2, kind: input, shape index: {}]
  %s3 = inlined_call_operand.hbm [shape: f32[32,32], index: 3, kind: input, shape index: {}]
  %s4 = inlined_call_operand.vmem [shape: f32[1,32], index: 4, kind: input, shape index: {}]
  %s5 = inlined_call_operand.hbm [shape: f32[32,32], index: 5, kind: input, shape index: {}]
  %s6 = inlined_call_operand.vmem [shape: f32[1,32], index: 6, kind: input, shape index: {}]
  %s7 = inlined_call_operand.hbm [shape: f32[32,32], index: 7, kind: input, shape index: {}]
  %s8 = inlined_call_operand.vmem [shape: f32[1,32], index: 8, kind: input, shape index: {}]
  %s9 = inlined_call_operand.hbm [shape: f32[32,32], index: 9, kind: input, shape index: {}]
  %s10 = inlined_call_operand.vmem [shape: f32[1,32], index: 10, kind: input, shape index: {}]
  %s11 = inlined_call_operand.hbm [shape: f32[2,8,32], index: 11, kind: output, shape index: {0}]
  %s12 = inlined_call_operand.hbm [shape: f32[2,4,8,8], index: 12, kind: output, shape index: {1}]
  %13 = xla_tuple %s11, %s12
  %s14 = sld [smem:[#allocation0]]
  $region90: #{tpu_custom_call.1} parent=0
    _
  %s16 = ssub.s32 1, %s14
  %s17 = scalar_select 0, %s16, %s14
  $region1: #{tpu_custom_call.1} parent=0
    #allocation2 [shape = 'u8[8192]{0}', space=vmem, size = 0x2000, scoped, tag = 'input window, operand 0, single buffered']
    #allocation3 [shape = 's32[1]{0}', space=sflag, size = 0x4, scoped, tag = 'scoped memory for tpu_custom_call.1']
    #allocation4 [shape = 's32[1]{0}', space=sflag, size = 0x4, scoped, tag = 'scoped memory for tpu_custom_call.1']
    #allocation5 [shape = 'u8[8192]{0}', space=vmem, size = 0x2000, scoped, tag = 'input window, operand 1, single buffered']
    #allocation6 [shape = 's32[1]{0}', space=sflag, size = 0x4, scoped, tag = 'scoped memory for tpu_custom_call.1']
    #allocation7 [shape = 'u8[8192]{0}', space=vmem, size = 0x2000, scoped, tag = 'input window, operand 2, single buffered']
    #allocation8 [shape = 'u8[16384]{0}', space=vmem, size = 0x4000, scoped, tag = 'input window, operand 3, single buffered']
    #allocation9 [shape = 's32[1]{0}', space=sflag, size = 0x4, scoped, tag = 'scoped memory for tpu_custom_call.1']
    #allocation10 [shape = 'u8[16384]{0}', space=vmem, size = 0x4000, scoped, tag = 'input window, operand 5, single buffered']
    #allocation11 [shape = 'u8[16384]{0}', space=vmem, size = 0x4000, scoped, tag = 'input window, operand 7, single buffered']
    #allocation12 [shape = 's32[1]{0}', space=sflag, size = 0x4, scoped, tag = 'scoped memory for tpu_custom_call.1']
    #allocation13 [shape = 'u8[16384]{0}', space=vmem, size = 0x4000, scoped, tag = 'input window, operand 9, single buffered']
    #allocation14 [shape = 'u8[8192]{0}', space=vmem, size = 0x2000, scoped, tag = 'output window, operand 0, single buffered']
    #allocation15 [shape = 'u8[32768]{0}', space=vmem, size = 0x8000, scoped, tag = 'output window, operand 1, single buffered']
    #allocation16 [shape = 's32[1]{0}', space=sflag, size = 0x4, scoped, tag = 'scoped memory for tpu_custom_call.1']
    %18 = vsyncpa [#allocation3], 0
    %19 = vsyncpa [#allocation6], 0
    %20 = vsyncpa [#allocation9], 0
    %21 = vsyncpa [#allocation12], 0
    %22 = vsyncpa [#allocation4], 0
    %23 = vsyncpa [#allocation16], 0
    // Predicated region
    $region2: #{tpu_custom_call.1} parent=1 // pred_check
      _
    $region3: #{tpu_custom_call.1} parent=1 // pred_check_branch
      %25 = sbr.rel (0) target = $region5
    $region4: #{tpu_custom_call.1} parent=1 // pred_region
      %s27 = ssub.s32 256, 256
      %28 = vsyncadd [#allocation3], %s27
      %s29 = sshll.u32 [#allocation2], 4
      %s30 = int_to_ptr.vmem [resolvable:$true] %s29
      %35 = dma.hbm_to_vmem [thread:$0]  %s0, 256, %s30, [#allocation3], 128, 128, 8
    $region5: #{tpu_custom_call.1} parent=1 // pred_fallthru
      _
    // Predicated region
    $region6: #{tpu_custom_call.1} parent=1 // pred_check
      _
    $region7: #{tpu_custom_call.1} parent=1 // pred_check_branch
      %37 = sbr.rel (0) target = $region9
    $region8: #{tpu_custom_call.1} parent=1 // pred_region
      %s39 = ssub.s32 256, 256
      %40 = vsyncadd [#allocation6], %s39
      %s41 = sshll.u32 [#allocation5], 4
      %s42 = int_to_ptr.vmem [resolvable:$true] %s41
      %47 = dma.hbm_to_vmem [thread:$0]  %s1, 256, %s42, [#allocation6], 128, 128, 8
    $region9: #{tpu_custom_call.1} parent=1 // pred_fallthru
      _
    // Predicated region
    $region10: #{tpu_custom_call.1} parent=1 // pred_check
      _
    $region11: #{tpu_custom_call.1} parent=1 // pred_check_branch
      %49 = sbr.rel (0) target = $region13
    $region12: #{tpu_custom_call.1} parent=1 // pred_region
      %s51 = ssub.s32 256, 256
      %52 = vsyncadd [#allocation6], %s51
      %s53 = sshll.u32 [#allocation7], 4
      %s54 = int_to_ptr.vmem [resolvable:$true] %s53
      %59 = dma.hbm_to_vmem [thread:$0]  %s2, 256, %s54, [#allocation6], 128, 128, 8
    $region13: #{tpu_custom_call.1} parent=1 // pred_fallthru
      _
    // Predicated region
    $region14: #{tpu_custom_call.1} parent=1 // pred_check
      _
    $region15: #{tpu_custom_call.1} parent=1 // pred_check_branch
      %61 = sbr.rel (0) target = $region17
    $region16: #{tpu_custom_call.1} parent=1 // pred_region
      %s63 = ssub.s32 512, 512
      %64 = vsyncadd [#allocation9], %s63
      %s65 = sshll.u32 [#allocation8], 4
      %s66 = int_to_ptr.vmem [resolvable:$true] %s65
      %71 = dma.hbm_to_vmem [thread:$0]  %s3, 512, %s66, [#allocation9], 128, 128, 8
    $region17: #{tpu_custom_call.1} parent=1 // pred_fallthru
      _
    // Predicated region
    $region18: #{tpu_custom_call.1} parent=1 // pred_check
      _
    $region19: #{tpu_custom_call.1} parent=1 // pred_check_branch
      %73 = sbr.rel (0) target = $region21
    $region20: #{tpu_custom_call.1} parent=1 // pred_region
      _
    $region21: #{tpu_custom_call.1} parent=1 // pred_fallthru
      _
    // Predicated region
    $region22: #{tpu_custom_call.1} parent=1 // pred_check
      _
    $region23: #{tpu_custom_call.1} parent=1 // pred_check_branch
      %75 = sbr.rel (0) target = $region25
    $region24: #{tpu_custom_call.1} parent=1 // pred_region
      %s77 = ssub.s32 512, 512
      %78 = vsyncadd [#allocation9], %s77
      %s79 = sshll.u32 [#allocation10], 4
      %s80 = int_to_ptr.vmem [resolvable:$true] %s79
      %85 = dma.hbm_to_vmem [thread:$0]  %s5, 512, %s80, [#allocation9], 128, 128, 8
    $region25: #{tpu_custom_call.1} parent=1 // pred_fallthru
      _
    // Predicated region
    $region26: #{tpu_custom_call.1} parent=1 // pred_check
      _
    $region27: #{tpu_custom_call.1} parent=1 // pred_check_branch
      %87 = sbr.rel (0) target = $region29
    $region28: #{tpu_custom_call.1} parent=1 // pred_region
      _
    $region29: #{tpu_custom_call.1} parent=1 // pred_fallthru
      _
    // Predicated region
    $region30: #{tpu_custom_call.1} parent=1 // pred_check
      _
    $region31: #{tpu_custom_call.1} parent=1 // pred_check_branch
      %89 = sbr.rel (0) target = $region33
    $region32: #{tpu_custom_call.1} parent=1 // pred_region
      %s91 = ssub.s32 512, 512
      %92 = vsyncadd [#allocation12], %s91
      %s93 = sshll.u32 [#allocation11], 4
      %s94 = int_to_ptr.vmem [resolvable:$true] %s93
      %99 = dma.hbm_to_vmem [thread:$0]  %s7, 512, %s94, [#allocation12], 128, 128, 8
    $region33: #{tpu_custom_call.1} parent=1 // pred_fallthru
      _
    // Predicated region
    $region34: #{tpu_custom_call.1} parent=1 // pred_check
      _
    $region35: #{tpu_custom_call.1} parent=1 // pred_check_branch
      %101 = sbr.rel (0) target = $region37
    $region36: #{tpu_custom_call.1} parent=1 // pred_region
      _
    $region37: #{tpu_custom_call.1} parent=1 // pred_fallthru
      _
    // Predicated region
    $region38: #{tpu_custom_call.1} parent=1 // pred_check
      _
    $region39: #{tpu_custom_call.1} parent=1 // pred_check_branch
      %103 = sbr.rel (0) target = $region41
    $region40: #{tpu_custom_call.1} parent=1 // pred_region
      %s105 = ssub.s32 512, 512
      %106 = vsyncadd [#allocation12], %s105
      %s107 = sshll.u32 [#allocation13], 4
      %s108 = int_to_ptr.vmem [resolvable:$true] %s107
      %113 = dma.hbm_to_vmem [thread:$0]  %s9, 512, %s108, [#allocation12], 128, 128, 8
    $region41: #{tpu_custom_call.1} parent=1 // pred_fallthru
      _
    // Predicated region
    $region42: #{tpu_custom_call.1} parent=1 // pred_check
      _
    $region43: #{tpu_custom_call.1} parent=1 // pred_check_branch
      %115 = sbr.rel (0) target = $region45
    $region44: #{tpu_custom_call.1} parent=1 // pred_region
      _
    $region45: #{tpu_custom_call.1} parent=1 // pred_fallthru
      _
    // Predicated region
    $region46: #{tpu_custom_call.1} parent=1 // pred_check
      _
    $region47: #{tpu_custom_call.1} parent=1 // pred_check_branch
      %117 = sbr.rel (0) target = $region49
    $region48: #{tpu_custom_call.1} parent=1 // pred_region
      %118 = dma.done [#allocation3], 256
    $region49: #{tpu_custom_call.1} parent=1 // pred_fallthru
      _
    // Predicated region
    $region50: #{tpu_custom_call.1} parent=1 // pred_check
      _
    $region51: #{tpu_custom_call.1} parent=1 // pred_check_branch
      %120 = sbr.rel (0) target = $region53
    $region52: #{tpu_custom_call.1} parent=1 // pred_region
      %121 = dma.done [#allocation6], 256
    $region53: #{tpu_custom_call.1} parent=1 // pred_fallthru
      _
    // Predicated region
    $region54: #{tpu_custom_call.1} parent=1 // pred_check
      _
    $region55: #{tpu_custom_call.1} parent=1 // pred_check_branch
      %123 = sbr.rel (0) target = $region57
    $region56: #{tpu_custom_call.1} parent=1 // pred_region
      %124 = dma.done [#allocation6], 256
    $region57: #{tpu_custom_call.1} parent=1 // pred_fallthru
      _
    // Predicated region
    $region58: #{tpu_custom_call.1} parent=1 // pred_check
      _
    $region59: #{tpu_custom_call.1} parent=1 // pred_check_branch
      %126 = sbr.rel (0) target = $region61
    $region60: #{tpu_custom_call.1} parent=1 // pred_region
      %127 = dma.done [#allocation9], 512
    $region61: #{tpu_custom_call.1} parent=1 // pred_fallthru
      _
    // Predicated region
    $region62: #{tpu_custom_call.1} parent=1 // pred_check
      _
    $region63: #{tpu_custom_call.1} parent=1 // pred_check_branch
      %129 = sbr.rel (0) target = $region65
    $region64: #{tpu_custom_call.1} parent=1 // pred_region
      %130 = dma.done [#allocation9], 512
    $region65: #{tpu_custom_call.1} parent=1 // pred_fallthru
      _
    // Predicated region
    $region66: #{tpu_custom_call.1} parent=1 // pred_check
      _
    $region67: #{tpu_custom_call.1} parent=1 // pred_check_branch
      %132 = sbr.rel (0) target = $region69
    $region68: #{tpu_custom_call.1} parent=1 // pred_region
      %133 = dma.done [#allocation12], 512
    $region69: #{tpu_custom_call.1} parent=1 // pred_fallthru
      _
    // Predicated region
    $region70: #{tpu_custom_call.1} parent=1 // pred_check
      _
    $region71: #{tpu_custom_call.1} parent=1 // pred_check_branch
      %135 = sbr.rel (0) target = $region73
    $region72: #{tpu_custom_call.1} parent=1 // pred_region
      %136 = dma.done [#allocation12], 512
    $region73: #{tpu_custom_call.1} parent=1 // pred_fallthru
      _
    %v137 = vld [vmem:[#allocation2] sm:$0xff]
    %v138 = vld [vmem:[#allocation2 + $0x8] sm:$0xff]
    %v139 = vld [vmem:[#allocation5] sm:$0xff]
    %v140 = vld [vmem:[#allocation5 + $0x8] sm:$0xff]
    %v141 = vld [vmem:[#allocation7] sm:$0xff]
    %v142 = vld [vmem:[#allocation7 + $0x8] sm:$0xff]
    %v143 = vld [vmem:[#allocation8] sm:$0xff]
    %v144 = vld [vmem:[#allocation8 + $0x8] sm:$0xff]
    %v145 = vld [vmem:[#allocation8 + $0x10] sm:$0xff]
    %v146 = vld [vmem:[#allocation8 + $0x18] sm:$0xff]
    %v147 = vld [vmem:[%s4] sm:$0x1]
    %v149 = vlaneseq
    %v150 = vshrl.u32 %v149, 7
    %v151 = vsub.s32 0, %v150
    %v152 = vrot.slane %v147, %v151
    %vm154 = vcmask 261120
    %v156 = vsel %vm154, %v137, 0
    %v159 = vsel %vm154, %v138, 0
    %161 = vmatprep.subr.mxu0 0.0
    %162 = vmatpush1.msra.mxu0 0.0
    %163 = vmatprep.subr.mxu0 0.0
    %164 = vmatpush1.msra.mxu0 0.0
    %165 = vmatprep.subr.mxu0 0.0
    %166 = vmatpush1.msra.mxu0 0.0
    %167 = vmatprep.subr.mxu0 0.0
    %168 = vmatpush1.msra.mxu0 0.0
    %169 = vmatprep.subr.mxu0 0.0
    %170 = vmatpush1.msra.mxu0 0.0
    %171 = vmatprep.subr.mxu0 0.0
    %172 = vmatpush1.msra.mxu0 0.0
    %173 = vmatprep.subr.mxu0 0.0
    %174 = vmatpush1.msra.mxu0 0.0
    %175 = vmatprep.subr.mxu0 0.0
    %176 = vmatpush1.msra.mxu0 0.0
    %177 = vmatprep.subr.mxu0 0.0
    %178 = vmatpush1.msra.mxu0 0.0
    %179 = vmatprep.subr.mxu0 0.0
    %180 = vmatpush1.msra.mxu0 0.0
    %181 = vmatprep.subr.mxu0 0.0
    %182 = vmatpush1.msra.mxu0 0.0
    %183 = vmatprep.subr.mxu0 0.0
    %184 = vmatpush1.msra.mxu0 0.0
    %185 = vmatprep.subr.mxu0 0.0
    %186 = vmatpush1.msra.mxu0 %v146
    %187 = vmatprep.subr.mxu0 0.0
    %188 = vmatpush1.msra.mxu0 %v145
    %189 = vmatprep.subr.mxu0 0.0
    %190 = vmatpush1.msra.mxu0 %v144
    %191 = vmatprep.subr.mxu0 0.0
    %192 = vmatpush1.msra.mxu0 %v143
    %193 = vmatprep.subr.mxu0 0.0
    %194 = vmatpush2.msra.mxu0 0.0
    %195 = vmatprep.subr.mxu0 0.0
    %196 = vmatpush2.msra.mxu0 0.0
    %197 = vmatprep.subr.mxu0 0.0
    %198 = vmatpush2.msra.mxu0 0.0
    %199 = vmatprep.subr.mxu0 0.0
    %200 = vmatpush2.msra.mxu0 0.0
    %201 = vmatprep.subr.mxu0 0.0
    %202 = vmatpush2.msra.mxu0 0.0
    %203 = vmatprep.subr.mxu0 0.0
    %204 = vmatpush2.msra.mxu0 0.0
    %205 = vmatprep.subr.mxu0 0.0
    %206 = vmatpush2.msra.mxu0 0.0
    %207 = vmatprep.subr.mxu0 0.0
    %208 = vmatpush2.msra.mxu0 0.0
    %209 = vmatprep.subr.mxu0 0.0
    %210 = vmatpush2.msra.mxu0 0.0
    %211 = vmatprep.subr.mxu0 0.0
    %212 = vmatpush2.msra.mxu0 0.0
    %213 = vmatprep.subr.mxu0 0.0
    %214 = vmatpush2.msra.mxu0 0.0
    %215 = vmatprep.subr.mxu0 0.0
    %216 = vmatpush2.msra.mxu0 0.0
    %217 = vmatprep.subr.mxu0 0.0
    %218 = vmatpush2.msra.mxu0 0.0
    %219 = vmatprep.subr.mxu0 0.0
    %220 = vmatpush2.msra.mxu0 0.0
    %221 = vmatprep.subr.mxu0 0.0
    %222 = vmatpush2.msra.mxu0 0.0
    %223 = vmatprep.subr.mxu0 0.0
    %224 = vmatpush2.msra.mxu0 0.0
    %225 = vmatprep.mubr.f32.mxu0 0.0
    %226 = vmatmul.mubr.f32.gmra.mxu0 %v156
    %v227 = vpop.f32.mrf.mxu0
    %v228 = vadd.f32 %v152, %v227
    %v229 = vpop.f32.mrf.mxu0
    %230 = vmatprep.mubr.f32.mxu0 0.0
    %231 = vmatmul.mubr.f32.gmra.mxu0 %v159
    %v232 = vpop.f32.mrf.mxu0
    %v233 = vadd.f32 %v152, %v232
    %v234 = vpop.f32.mrf.mxu0
    %235 = vdwg.mxu0
    %v236 = vld [vmem:[#allocation10] sm:$0xff]
    %v237 = vld [vmem:[#allocation10 + $0x8] sm:$0xff]
    %v238 = vld [vmem:[#allocation10 + $0x10] sm:$0xff]
    %v239 = vld [vmem:[#allocation10 + $0x18] sm:$0xff]
    %v240 = vld [vmem:[%s6] sm:$0x1]
    %v242 = vlaneseq
    %v243 = vshrl.u32 %v242, 7
    %v244 = vsub.s32 0, %v243
    %v245 = vrot.slane %v240, %v244
    %v248 = vsel %vm154, %v139, 0
    %v251 = vsel %vm154, %v140, 0
    %253 = vmatprep.subr.mxu0 0.0
    %254 = vmatpush1.msra.mxu0 0.0
    %255 = vmatprep.subr.mxu0 0.0
    %256 = vmatpush1.msra.mxu0 0.0
    %257 = vmatprep.subr.mxu0 0.0
    %258 = vmatpush1.msra.mxu0 0.0
    %259 = vmatprep.subr.mxu0 0.0
    %260 = vmatpush1.msra.mxu0 0.0
    %261 = vmatprep.subr.mxu0 0.0
    %262 = vmatpush1.msra.mxu0 0.0
    %263 = vmatprep.subr.mxu0 0.0
    %264 = vmatpush1.msra.mxu0 0.0
    %265 = vmatprep.subr.mxu0 0.0
    %266 = vmatpush1.msra.mxu0 0.0
    %267 = vmatprep.subr.mxu0 0.0
    %268 = vmatpush1.msra.mxu0 0.0
    %269 = vmatprep.subr.mxu0 0.0
    %270 = vmatpush1.msra.mxu0 0.0
    %271 = vmatprep.subr.mxu0 0.0
    %272 = vmatpush1.msra.mxu0 0.0
    %273 = vmatprep.subr.mxu0 0.0
    %274 = vmatpush1.msra.mxu0 0.0
    %275 = vmatprep.subr.mxu0 0.0
    %276 = vmatpush1.msra.mxu0 0.0
    %277 = vmatprep.subr.mxu0 0.0
    %278 = vmatpush1.msra.mxu0 %v239
    %279 = vmatprep.subr.mxu0 0.0
    %280 = vmatpush1.msra.mxu0 %v238
    %281 = vmatprep.subr.mxu0 0.0
    %282 = vmatpush1.msra.mxu0 %v237
    %283 = vmatprep.subr.mxu0 0.0
    %284 = vmatpush1.msra.mxu0 %v236
    %285 = vmatprep.subr.mxu0 0.0
    %286 = vmatpush2.msra.mxu0 0.0
    %287 = vmatprep.subr.mxu0 0.0
    %288 = vmatpush2.msra.mxu0 0.0
    %289 = vmatprep.subr.mxu0 0.0
    %290 = vmatpush2.msra.mxu0 0.0
    %291 = vmatprep.subr.mxu0 0.0
    %292 = vmatpush2.msra.mxu0 0.0
    %293 = vmatprep.subr.mxu0 0.0
    %294 = vmatpush2.msra.mxu0 0.0
    %295 = vmatprep.subr.mxu0 0.0
    %296 = vmatpush2.msra.mxu0 0.0
    %297 = vmatprep.subr.mxu0 0.0
    %298 = vmatpush2.msra.mxu0 0.0
    %299 = vmatprep.subr.mxu0 0.0
    %300 = vmatpush2.msra.mxu0 0.0
    %301 = vmatprep.subr.mxu0 0.0
    %302 = vmatpush2.msra.mxu0 0.0
    %303 = vmatprep.subr.mxu0 0.0
    %304 = vmatpush2.msra.mxu0 0.0
    %305 = vmatprep.subr.mxu0 0.0
    %306 = vmatpush2.msra.mxu0 0.0
    %307 = vmatprep.subr.mxu0 0.0
    %308 = vmatpush2.msra.mxu0 0.0
    %309 = vmatprep.subr.mxu0 0.0
    %310 = vmatpush2.msra.mxu0 0.0
    %311 = vmatprep.subr.mxu0 0.0
    %312 = vmatpush2.msra.mxu0 0.0
    %313 = vmatprep.subr.mxu0 0.0
    %314 = vmatpush2.msra.mxu0 0.0
    %315 = vmatprep.subr.mxu0 0.0
    %316 = vmatpush2.msra.mxu0 0.0
    %317 = vmatprep.mubr.f32.mxu0 0.0
    %318 = vmatmul.mubr.f32.gmra.mxu0 %v248
    %v319 = vpop.f32.mrf.mxu0
    %v320 = vadd.f32 %v245, %v319
    %v321 = vpop.f32.mrf.mxu0
    %322 = vmatprep.mubr.f32.mxu0 0.0
    %323 = vmatmul.mubr.f32.gmra.mxu0 %v251
    %v324 = vpop.f32.mrf.mxu0
    %v325 = vadd.f32 %v245, %v324
    %v326 = vpop.f32.mrf.mxu0
    %327 = vdwg.mxu0
    %v328 = vld [vmem:[#allocation11] sm:$0xff]
    %v329 = vld [vmem:[#allocation11 + $0x8] sm:$0xff]
    %v330 = vld [vmem:[#allocation11 + $0x10] sm:$0xff]
    %v331 = vld [vmem:[#allocation11 + $0x18] sm:$0xff]
    %v332 = vld [vmem:[%s8] sm:$0x1]
    %v334 = vlaneseq
    %v335 = vshrl.u32 %v334, 7
    %v336 = vsub.s32 0, %v335
    %v337 = vrot.slane %v332, %v336
    %v340 = vsel %vm154, %v141, 0
    %v343 = vsel %vm154, %v142, 0
    %345 = vmatprep.subr.mxu0 0.0
    %346 = vmatpush1.msra.mxu0 0.0
    %347 = vmatprep.subr.mxu0 0.0
    %348 = vmatpush1.msra.mxu0 0.0
    %349 = vmatprep.subr.mxu0 0.0
    %350 = vmatpush1.msra.mxu0 0.0
    %351 = vmatprep.subr.mxu0 0.0
    %352 = vmatpush1.msra.mxu0 0.0
    %353 = vmatprep.subr.mxu0 0.0
    %354 = vmatpush1.msra.mxu0 0.0
    %355 = vmatprep.subr.mxu0 0.0
    %356 = vmatpush1.msra.mxu0 0.0
    %357 = vmatprep.subr.mxu0 0.0
    %358 = vmatpush1.msra.mxu0 0.0
    %359 = vmatprep.subr.mxu0 0.0
    %360 = vmatpush1.msra.mxu0 0.0
    %361 = vmatprep.subr.mxu0 0.0
    %362 = vmatpush1.msra.mxu0 0.0
    %363 = vmatprep.subr.mxu0 0.0
    %364 = vmatpush1.msra.mxu0 0.0
    %365 = vmatprep.subr.mxu0 0.0
    %366 = vmatpush1.msra.mxu0 0.0
    %367 = vmatprep.subr.mxu0 0.0
    %368 = vmatpush1.msra.mxu0 0.0
    %369 = vmatprep.subr.mxu0 0.0
    %370 = vmatpush1.msra.mxu0 %v331
    %371 = vmatprep.subr.mxu0 0.0
    %372 = vmatpush1.msra.mxu0 %v330
    %373 = vmatprep.subr.mxu0 0.0
    %374 = vmatpush1.msra.mxu0 %v329
    %375 = vmatprep.subr.mxu0 0.0
    %376 = vmatpush1.msra.mxu0 %v328
    %377 = vmatprep.subr.mxu0 0.0
    %378 = vmatpush2.msra.mxu0 0.0
    %379 = vmatprep.subr.mxu0 0.0
    %380 = vmatpush2.msra.mxu0 0.0
    %381 = vmatprep.subr.mxu0 0.0
    %382 = vmatpush2.msra.mxu0 0.0
    %383 = vmatprep.subr.mxu0 0.0
    %384 = vmatpush2.msra.mxu0 0.0
    %385 = vmatprep.subr.mxu0 0.0
    %386 = vmatpush2.msra.mxu0 0.0
    %387 = vmatprep.subr.mxu0 0.0
    %388 = vmatpush2.msra.mxu0 0.0
    %389 = vmatprep.subr.mxu0 0.0
    %390 = vmatpush2.msra.mxu0 0.0
    %391 = vmatprep.subr.mxu0 0.0
    %392 = vmatpush2.msra.mxu0 0.0
    %393 = vmatprep.subr.mxu0 0.0
    %394 = vmatpush2.msra.mxu0 0.0
    %395 = vmatprep.subr.mxu0 0.0
    %396 = vmatpush2.msra.mxu0 0.0
    %397 = vmatprep.subr.mxu0 0.0
    %398 = vmatpush2.msra.mxu0 0.0
    %399 = vmatprep.subr.mxu0 0.0
    %400 = vmatpush2.msra.mxu0 0.0
    %401 = vmatprep.subr.mxu0 0.0
    %402 = vmatpush2.msra.mxu0 0.0
    %403 = vmatprep.subr.mxu0 0.0
    %404 = vmatpush2.msra.mxu0 0.0
    %405 = vmatprep.subr.mxu0 0.0
    %406 = vmatpush2.msra.mxu0 0.0
    %407 = vmatprep.subr.mxu0 0.0
    %408 = vmatpush2.msra.mxu0 0.0
    %409 = vmatprep.mubr.f32.mxu0 0.0
    %410 = vmatmul.mubr.f32.gmra.mxu0 %v340
    %v411 = vpop.f32.mrf.mxu0
    %v412 = vadd.f32 %v337, %v411
    %v413 = vpop.f32.mrf.mxu0
    %414 = vmatprep.mubr.f32.mxu0 0.0
    %415 = vmatmul.mubr.f32.gmra.mxu0 %v343
    %v416 = vpop.f32.mrf.mxu0
    %v417 = vadd.f32 %v337, %v416
    %v418 = vpop.f32.mrf.mxu0
    %419 = vdwg.mxu0
    %vm420 = vcmask 64512
    %v422 = vsel %vm420, %v228, 0
    %v425 = vsel %vm420, %v320, 0
    %427 = vmatprep.subr.mxu0 0.0
    %428 = vmatpush1.xpose.msra.mxu0 0.0
    %429 = vmatprep.subr.mxu0 0.0
    %430 = vmatpush1.xpose.msra.mxu0 0.0
    %431 = vmatprep.subr.mxu0 0.0
    %432 = vmatpush1.xpose.msra.mxu0 0.0
    %433 = vmatprep.subr.mxu0 0.0
    %434 = vmatpush1.xpose.msra.mxu0 0.0
    %435 = vmatprep.subr.mxu0 0.0
    %436 = vmatpush1.xpose.msra.mxu0 0.0
    %437 = vmatprep.subr.mxu0 0.0
    %438 = vmatpush1.xpose.msra.mxu0 0.0
    %439 = vmatprep.subr.mxu0 0.0
    %440 = vmatpush1.xpose.msra.mxu0 0.0
    %441 = vmatprep.subr.mxu0 0.0
    %442 = vmatpush1.xpose.msra.mxu0 0.0
    %443 = vmatprep.subr.mxu0 0.0
    %444 = vmatpush1.xpose.msra.mxu0 0.0
    %445 = vmatprep.subr.mxu0 0.0
    %446 = vmatpush1.xpose.msra.mxu0 0.0
    %447 = vmatprep.subr.mxu0 0.0
    %448 = vmatpush1.xpose.msra.mxu0 0.0
    %449 = vmatprep.subr.mxu0 0.0
    %450 = vmatpush1.xpose.msra.mxu0 0.0
    %451 = vmatprep.subr.mxu0 0.0
    %452 = vmatpush1.xpose.msra.mxu0 0.0
    %453 = vmatprep.subr.mxu0 0.0
    %454 = vmatpush1.xpose.msra.mxu0 0.0
    %455 = vmatprep.subr.mxu0 0.0
    %456 = vmatpush1.xpose.msra.mxu0 0.0
    %457 = vmatprep.subr.mxu0 0.0
    %458 = vmatpush1.xpose.msra.mxu0 %v425
    %459 = vmatprep.subr.mxu0 0.0
    %460 = vmatpush2.xpose.msra.mxu0 0.0
    %461 = vmatprep.subr.mxu0 0.0
    %462 = vmatpush2.xpose.msra.mxu0 0.0
    %463 = vmatprep.subr.mxu0 0.0
    %464 = vmatpush2.xpose.msra.mxu0 0.0
    %465 = vmatprep.subr.mxu0 0.0
    %466 = vmatpush2.xpose.msra.mxu0 0.0
    %467 = vmatprep.subr.mxu0 0.0
    %468 = vmatpush2.xpose.msra.mxu0 0.0
    %469 = vmatprep.subr.mxu0 0.0
    %470 = vmatpush2.xpose.msra.mxu0 0.0
    %471 = vmatprep.subr.mxu0 0.0
    %472 = vmatpush2.xpose.msra.mxu0 0.0
    %473 = vmatprep.subr.mxu0 0.0
    %474 = vmatpush2.xpose.msra.mxu0 0.0
    %475 = vmatprep.subr.mxu0 0.0
    %476 = vmatpush2.xpose.msra.mxu0 0.0
    %477 = vmatprep.subr.mxu0 0.0
    %478 = vmatpush2.xpose.msra.mxu0 0.0
    %479 = vmatprep.subr.mxu0 0.0
    %480 = vmatpush2.xpose.msra.mxu0 0.0
    %481 = vmatprep.subr.mxu0 0.0
    %482 = vmatpush2.xpose.msra.mxu0 0.0
    %483 = vmatprep.subr.mxu0 0.0
    %484 = vmatpush2.xpose.msra.mxu0 0.0
    %485 = vmatprep.subr.mxu0 0.0
    %486 = vmatpush2.xpose.msra.mxu0 0.0
    %487 = vmatprep.subr.mxu0 0.0
    %488 = vmatpush2.xpose.msra.mxu0 0.0
    %489 = vmatprep.subr.mxu0 0.0
    %490 = vmatpush2.xpose.msra.mxu0 0.0
    %491 = vmatprep.mubr.f32.mxu0 0.0
    %492 = vmatmul.mubr.f32.gmra.mxu0 %v422
    %v493 = vpop.f32.mrf.mxu0
    %v494 = vadd.f32 0.0, %v493
    %v495 = vpop.f32.mrf.mxu0
    %496 = vdwg.mxu0
    %v497 = vsel %vm420, %v494, -inf
    %498 = vmax.xlane.f32.xlu0 %v497
    %v499 = vpop.xlane.xlu0 %498
    %v500 = vsub.f32 %v494, %v499
    %v501 = vmul.f32 %v500, 1.442695
    %v502 = vpow.pop %v501
    %v503 = vsel %vm420, %v502, 0.0
    %504 = vadd.xlane.f32.xlu0 %v503
    %v505 = vpop.xlane.xlu0 %504
    %v506 = vrcp.pop %v505
    %v507 = vmul.f32 %v502, %v506
    %508 = vst.msk [vmem:[#allocation15] sm:$0xff] %vm420, %v507
    %v510 = vsel %vm420, %v507, 0
    %512 = vmatprep.subr.mxu0 0.0
    %513 = vmatpush1.msra.mxu0 0.0
    %514 = vmatprep.subr.mxu0 0.0
    %515 = vmatpush1.msra.mxu0 0.0
    %516 = vmatprep.subr.mxu0 0.0
    %517 = vmatpush1.msra.mxu0 0.0
    %518 = vmatprep.subr.mxu0 0.0
    %519 = vmatpush1.msra.mxu0 0.0
    %520 = vmatprep.subr.mxu0 0.0
    %521 = vmatpush1.msra.mxu0 0.0
    %522 = vmatprep.subr.mxu0 0.0
    %523 = vmatpush1.msra.mxu0 0.0
    %524 = vmatprep.subr.mxu0 0.0
    %525 = vmatpush1.msra.mxu0 0.0
    %526 = vmatprep.subr.mxu0 0.0
    %527 = vmatpush1.msra.mxu0 0.0
    %528 = vmatprep.subr.mxu0 0.0
    %529 = vmatpush1.msra.mxu0 0.0
    %530 = vmatprep.subr.mxu0 0.0
    %531 = vmatpush1.msra.mxu0 0.0
    %532 = vmatprep.subr.mxu0 0.0
    %533 = vmatpush1.msra.mxu0 0.0
    %534 = vmatprep.subr.mxu0 0.0
    %535 = vmatpush1.msra.mxu0 0.0
    %536 = vmatprep.subr.mxu0 0.0
    %537 = vmatpush1.msra.mxu0 0.0
    %538 = vmatprep.subr.mxu0 0.0
    %539 = vmatpush1.msra.mxu0 0.0
    %540 = vmatprep.subr.mxu0 0.0
    %541 = vmatpush1.msra.mxu0 0.0
    %542 = vmatprep.subr.mxu0 0.0
    %543 = vmatpush1.msra.mxu0 %v412
    %544 = vmatprep.subr.mxu0 0.0
    %545 = vmatpush2.msra.mxu0 0.0
    %546 = vmatprep.subr.mxu0 0.0
    %547 = vmatpush2.msra.mxu0 0.0
    %548 = vmatprep.subr.mxu0 0.0
    %549 = vmatpush2.msra.mxu0 0.0
    %550 = vmatprep.subr.mxu0 0.0
    %551 = vmatpush2.msra.mxu0 0.0
    %552 = vmatprep.subr.mxu0 0.0
    %553 = vmatpush2.msra.mxu0 0.0
    %554 = vmatprep.subr.mxu0 0.0
    %555 = vmatpush2.msra.mxu0 0.0
    %556 = vmatprep.subr.mxu0 0.0
    %557 = vmatpush2.msra.mxu0 0.0
    %558 = vmatprep.subr.mxu0 0.0
    %559 = vmatpush2.msra.mxu0 0.0
    %560 = vmatprep.subr.mxu0 0.0
    %561 = vmatpush2.msra.mxu0 0.0
    %562 = vmatprep.subr.mxu0 0.0
    %563 = vmatpush2.msra.mxu0 0.0
    %564 = vmatprep.subr.mxu0 0.0
    %565 = vmatpush2.msra.mxu0 0.0
    %566 = vmatprep.subr.mxu0 0.0
    %567 = vmatpush2.msra.mxu0 0.0
    %568 = vmatprep.subr.mxu0 0.0
    %569 = vmatpush2.msra.mxu0 0.0
    %570 = vmatprep.subr.mxu0 0.0
    %571 = vmatpush2.msra.mxu0 0.0
    %572 = vmatprep.subr.mxu0 0.0
    %573 = vmatpush2.msra.mxu0 0.0
    %574 = vmatprep.subr.mxu0 0.0
    %575 = vmatpush2.msra.mxu0 0.0
    %576 = vmatprep.mubr.f32.mxu0 0.0
    %577 = vmatmul.mubr.f32.gmra.mxu0 %v510
    %v578 = vpop.f32.mrf.mxu0
    %v579 = vadd.f32 0.0, %v578
    %v580 = vpop.f32.mrf.mxu0
    %581 = vdwg.mxu0
    %582 = vrot.lane.b32.xlu0 %v228, 120
    %v583 = vpop.permute.xlu0 %582
    %584 = vrot.lane.b32.xlu0 %v320, 120
    %v585 = vpop.permute.xlu0 %584
    %v586 = vsel %vm420, %v583, 0
    %v588 = vsel %vm420, %v585, 0
    %590 = vmatprep.subr.mxu0 0.0
    %591 = vmatpush1.xpose.msra.mxu0 0.0
    %592 = vmatprep.subr.mxu0 0.0
    %593 = vmatpush1.xpose.msra.mxu0 0.0
    %594 = vmatprep.subr.mxu0 0.0
    %595 = vmatpush1.xpose.msra.mxu0 0.0
    %596 = vmatprep.subr.mxu0 0.0
    %597 = vmatpush1.xpose.msra.mxu0 0.0
    %598 = vmatprep.subr.mxu0 0.0
    %599 = vmatpush1.xpose.msra.mxu0 0.0
    %600 = vmatprep.subr.mxu0 0.0
    %601 = vmatpush1.xpose.msra.mxu0 0.0
    %602 = vmatprep.subr.mxu0 0.0
    %603 = vmatpush1.xpose.msra.mxu0 0.0
    %604 = vmatprep.subr.mxu0 0.0
    %605 = vmatpush1.xpose.msra.mxu0 0.0
    %606 = vmatprep.subr.mxu0 0.0
    %607 = vmatpush1.xpose.msra.mxu0 0.0
    %608 = vmatprep.subr.mxu0 0.0
    %609 = vmatpush1.xpose.msra.mxu0 0.0
    %610 = vmatprep.subr.mxu0 0.0
    %611 = vmatpush1.xpose.msra.mxu0 0.0
    %612 = vmatprep.subr.mxu0 0.0
    %613 = vmatpush1.xpose.msra.mxu0 0.0
    %614 = vmatprep.subr.mxu0 0.0
    %615 = vmatpush1.xpose.msra.mxu0 0.0
    %616 = vmatprep.subr.mxu0 0.0
    %617 = vmatpush1.xpose.msra.mxu0 0.0
    %618 = vmatprep.subr.mxu0 0.0
    %619 = vmatpush1.xpose.msra.mxu0 0.0
    %620 = vmatprep.subr.mxu0 0.0
    %621 = vmatpush1.xpose.msra.mxu0 %v588
    %622 = vmatprep.subr.mxu0 0.0
    %623 = vmatpush2.xpose.msra.mxu0 0.0
    %624 = vmatprep.subr.mxu0 0.0
    %625 = vmatpush2.xpose.msra.mxu0 0.0
    %626 = vmatprep.subr.mxu0 0.0
    %627 = vmatpush2.xpose.msra.mxu0 0.0
    %628 = vmatprep.subr.mxu0 0.0
    %629 = vmatpush2.xpose.msra.mxu0 0.0
    %630 = vmatprep.subr.mxu0 0.0
    %631 = vmatpush2.xpose.msra.mxu0 0.0
    %632 = vmatprep.subr.mxu0 0.0
    %633 = vmatpush2.xpose.msra.mxu0 0.0
    %634 = vmatprep.subr.mxu0 0.0
    %635 = vmatpush2.xpose.msra.mxu0 0.0
    %636 = vmatprep.subr.mxu0 0.0
    %637 = vmatpush2.xpose.msra.mxu0 0.0
    %638 = vmatprep.subr.mxu0 0.0
    %639 = vmatpush2.xpose.msra.mxu0 0.0
    %640 = vmatprep.subr.mxu0 0.0
    %641 = vmatpush2.xpose.msra.mxu0 0.0
    %642 = vmatprep.subr.mxu0 0.0
    %643 = vmatpush2.xpose.msra.mxu0 0.0
    %644 = vmatprep.subr.mxu0 0.0
    %645 = vmatpush2.xpose.msra.mxu0 0.0
    %646 = vmatprep.subr.mxu0 0.0
    %647 = vmatpush2.xpose.msra.mxu0 0.0
    %648 = vmatprep.subr.mxu0 0.0
    %649 = vmatpush2.xpose.msra.mxu0 0.0
    %650 = vmatprep.subr.mxu0 0.0
    %651 = vmatpush2.xpose.msra.mxu0 0.0
    %652 = vmatprep.subr.mxu0 0.0
    %653 = vmatpush2.xpose.msra.mxu0 0.0
    %654 = vmatprep.mubr.f32.mxu0 0.0
    %655 = vmatmul.mubr.f32.gmra.mxu0 %v586
    %v656 = vpop.f32.mrf.mxu0
    %v657 = vadd.f32 0.0, %v656
    %v658 = vpop.f32.mrf.mxu0
    %659 = vdwg.mxu0
    %v660 = vsel %vm420, %v657, -inf
    %661 = vmax.xlane.f32.xlu0 %v660
    %v662 = vpop.xlane.xlu0 %661
    %v663 = vsub.f32 %v657, %v662
    %v664 = vmul.f32 %v663, 1.442695
    %v665 = vpow.pop %v664
    %v666 = vsel %vm420, %v665, 0.0
    %667 = vadd.xlane.f32.xlu0 %v666
    %v668 = vpop.xlane.xlu0 %667
    %v669 = vrcp.pop %v668
    %v670 = vmul.f32 %v665, %v669
    %s671 = scalar_lea.vmem [#allocation15], 8
    %672 = vst.msk [vmem:[%s671] sm:$0xff] %vm420, %v670
    %674 = vrot.lane.b32.xlu0 %v412, 120
    %v675 = vpop.permute.xlu0 %674
    %v678 = vsel %vm420, %v670, 0
    %680 = vmatprep.subr.mxu0 0.0
    %681 = vmatpush1.msra.mxu0 0.0
    %682 = vmatprep.subr.mxu0 0.0
    %683 = vmatpush1.msra.mxu0 0.0
    %684 = vmatprep.subr.mxu0 0.0
    %685 = vmatpush1.msra.mxu0 0.0
    %686 = vmatprep.subr.mxu0 0.0
    %687 = vmatpush1.msra.mxu0 0.0
    %688 = vmatprep.subr.mxu0 0.0
    %689 = vmatpush1.msra.mxu0 0.0
    %690 = vmatprep.subr.mxu0 0.0
    %691 = vmatpush1.msra.mxu0 0.0
    %692 = vmatprep.subr.mxu0 0.0
    %693 = vmatpush1.msra.mxu0 0.0
    %694 = vmatprep.subr.mxu0 0.0
    %695 = vmatpush1.msra.mxu0 0.0
    %696 = vmatprep.subr.mxu0 0.0
    %697 = vmatpush1.msra.mxu0 0.0
    %698 = vmatprep.subr.mxu0 0.0
    %699 = vmatpush1.msra.mxu0 0.0
    %700 = vmatprep.subr.mxu0 0.0
    %701 = vmatpush1.msra.mxu0 0.0
    %702 = vmatprep.subr.mxu0 0.0
    %703 = vmatpush1.msra.mxu0 0.0
    %704 = vmatprep.subr.mxu0 0.0
    %705 = vmatpush1.msra.mxu0 0.0
    %706 = vmatprep.subr.mxu0 0.0
    %707 = vmatpush1.msra.mxu0 0.0
    %708 = vmatprep.subr.mxu0 0.0
    %709 = vmatpush1.msra.mxu0 0.0
    %710 = vmatprep.subr.mxu0 0.0
    %711 = vmatpush1.msra.mxu0 %v675
    %712 = vmatprep.subr.mxu0 0.0
    %713 = vmatpush2.msra.mxu0 0.0
    %714 = vmatprep.subr.mxu0 0.0
    %715 = vmatpush2.msra.mxu0 0.0
    %716 = vmatprep.subr.mxu0 0.0
    %717 = vmatpush2.msra.mxu0 0.0
    %718 = vmatprep.subr.mxu0 0.0
    %719 = vmatpush2.msra.mxu0 0.0
    %720 = vmatprep.subr.mxu0 0.0
    %721 = vmatpush2.msra.mxu0 0.0
    %722 = vmatprep.subr.mxu0 0.0
    %723 = vmatpush2.msra.mxu0 0.0
    %724 = vmatprep.subr.mxu0 0.0
    %725 = vmatpush2.msra.mxu0 0.0
    %726 = vmatprep.subr.mxu0 0.0
    %727 = vmatpush2.msra.mxu0 0.0
    %728 = vmatprep.subr.mxu0 0.0
    %729 = vmatpush2.msra.mxu0 0.0
    %730 = vmatprep.subr.mxu0 0.0
    %731 = vmatpush2.msra.mxu0 0.0
    %732 = vmatprep.subr.mxu0 0.0
    %733 = vmatpush2.msra.mxu0 0.0
    %734 = vmatprep.subr.mxu0 0.0
    %735 = vmatpush2.msra.mxu0 0.0
    %736 = vmatprep.subr.mxu0 0.0
    %737 = vmatpush2.msra.mxu0 0.0
    %738 = vmatprep.subr.mxu0 0.0
    %739 = vmatpush2.msra.mxu0 0.0
    %740 = vmatprep.subr.mxu0 0.0
    %741 = vmatpush2.msra.mxu0 0.0
    %742 = vmatprep.subr.mxu0 0.0
    %743 = vmatpush2.msra.mxu0 0.0
    %744 = vmatprep.mubr.f32.mxu0 0.0
    %745 = vmatmul.mubr.f32.gmra.mxu0 %v678
    %v746 = vpop.f32.mrf.mxu0
    %v747 = vadd.f32 0.0, %v746
    %v748 = vpop.f32.mrf.mxu0
    %749 = vdwg.mxu0
    %750 = vrot.lane.b32.xlu0 %v228, 112
    %v751 = vpop.permute.xlu0 %750
    %752 = vrot.lane.b32.xlu0 %v320, 112
    %v753 = vpop.permute.xlu0 %752
    %v754 = vsel %vm420, %v751, 0
    %v756 = vsel %vm420, %v753, 0
    %758 = vmatprep.subr.mxu0 0.0
    %759 = vmatpush1.xpose.msra.mxu0 0.0
    %760 = vmatprep.subr.mxu0 0.0
    %761 = vmatpush1.xpose.msra.mxu0 0.0
    %762 = vmatprep.subr.mxu0 0.0
    %763 = vmatpush1.xpose.msra.mxu0 0.0
    %764 = vmatprep.subr.mxu0 0.0
    %765 = vmatpush1.xpose.msra.mxu0 0.0
    %766 = vmatprep.subr.mxu0 0.0
    %767 = vmatpush1.xpose.msra.mxu0 0.0
    %768 = vmatprep.subr.mxu0 0.0
    %769 = vmatpush1.xpose.msra.mxu0 0.0
    %770 = vmatprep.subr.mxu0 0.0
    %771 = vmatpush1.xpose.msra.mxu0 0.0
    %772 = vmatprep.subr.mxu0 0.0
    %773 = vmatpush1.xpose.msra.mxu0 0.0
    %774 = vmatprep.subr.mxu0 0.0
    %775 = vmatpush1.xpose.msra.mxu0 0.0
    %776 = vmatprep.subr.mxu0 0.0
    %777 = vmatpush1.xpose.msra.mxu0 0.0
    %778 = vmatprep.subr.mxu0 0.0
    %779 = vmatpush1.xpose.msra.mxu0 0.0
    %780 = vmatprep.subr.mxu0 0.0
    %781 = vmatpush1.xpose.msra.mxu0 0.0
    %782 = vmatprep.subr.mxu0 0.0
    %783 = vmatpush1.xpose.msra.mxu0 0.0
    %784 = vmatprep.subr.mxu0 0.0
    %785 = vmatpush1.xpose.msra.mxu0 0.0
    %786 = vmatprep.subr.mxu0 0.0
    %787 = vmatpush1.xpose.msra.mxu0 0.0
    %788 = vmatprep.subr.mxu0 0.0
    %789 = vmatpush1.xpose.msra.mxu0 %v756
    %790 = vmatprep.subr.mxu0 0.0
    %791 = vmatpush2.xpose.msra.mxu0 0.0
    %792 = vmatprep.subr.mxu0 0.0
    %793 = vmatpush2.xpose.msra.mxu0 0.0
    %794 = vmatprep.subr.mxu0 0.0
    %795 = vmatpush2.xpose.msra.mxu0 0.0
    %796 = vmatprep.subr.mxu0 0.0
    %797 = vmatpush2.xpose.msra.mxu0 0.0
    %798 = vmatprep.subr.mxu0 0.0
    %799 = vmatpush2.xpose.msra.mxu0 0.0
    %800 = vmatprep.subr.mxu0 0.0
    %801 = vmatpush2.xpose.msra.mxu0 0.0
    %802 = vmatprep.subr.mxu0 0.0
    %803 = vmatpush2.xpose.msra.mxu0 0.0
    %804 = vmatprep.subr.mxu0 0.0
    %805 = vmatpush2.xpose.msra.mxu0 0.0
    %806 = vmatprep.subr.mxu0 0.0
    %807 = vmatpush2.xpose.msra.mxu0 0.0
    %808 = vmatprep.subr.mxu0 0.0
    %809 = vmatpush2.xpose.msra.mxu0 0.0
    %810 = vmatprep.subr.mxu0 0.0
    %811 = vmatpush2.xpose.msra.mxu0 0.0
    %812 = vmatprep.subr.mxu0 0.0
    %813 = vmatpush2.xpose.msra.mxu0 0.0
    %814 = vmatprep.subr.mxu0 0.0
    %815 = vmatpush2.xpose.msra.mxu0 0.0
    %816 = vmatprep.subr.mxu0 0.0
    %817 = vmatpush2.xpose.msra.mxu0 0.0
    %818 = vmatprep.subr.mxu0 0.0
    %819 = vmatpush2.xpose.msra.mxu0 0.0
    %820 = vmatprep.subr.mxu0 0.0
    %821 = vmatpush2.xpose.msra.mxu0 0.0
    %822 = vmatprep.mubr.f32.mxu0 0.0
    %823 = vmatmul.mubr.f32.gmra.mxu0 %v754
    %v824 = vpop.f32.mrf.mxu0
    %v825 = vadd.f32 0.0, %v824
    %v826 = vpop.f32.mrf.mxu0
    %827 = vdwg.mxu0
    %v828 = vsel %vm420, %v825, -inf
    %829 = vmax.xlane.f32.xlu0 %v828
    %v830 = vpop.xlane.xlu0 %829
    %v831 = vsub.f32 %v825, %v830
    %v832 = vmul.f32 %v831, 1.442695
    %v833 = vpow.pop %v832
    %v834 = vsel %vm420, %v833, 0.0
    %835 = vadd.xlane.f32.xlu0 %v834
    %v836 = vpop.xlane.xlu0 %835
    %v837 = vrcp.pop %v836
    %v838 = vmul.f32 %v833, %v837
    %s839 = scalar_lea.vmem [#allocation15], 16
    %840 = vst.msk [vmem:[%s839] sm:$0xff] %vm420, %v838
    %841 = vrot.lane.b32.xlu0 %v412, 112
    %v842 = vpop.permute.xlu0 %841
    %v845 = vsel %vm420, %v838, 0
    %847 = vmatprep.subr.mxu0 0.0
    %848 = vmatpush1.msra.mxu0 0.0
    %849 = vmatprep.subr.mxu0 0.0
    %850 = vmatpush1.msra.mxu0 0.0
    %851 = vmatprep.subr.mxu0 0.0
    %852 = vmatpush1.msra.mxu0 0.0
    %853 = vmatprep.subr.mxu0 0.0
    %854 = vmatpush1.msra.mxu0 0.0
    %855 = vmatprep.subr.mxu0 0.0
    %856 = vmatpush1.msra.mxu0 0.0
    %857 = vmatprep.subr.mxu0 0.0
    %858 = vmatpush1.msra.mxu0 0.0
    %859 = vmatprep.subr.mxu0 0.0
    %860 = vmatpush1.msra.mxu0 0.0
    %861 = vmatprep.subr.mxu0 0.0
    %862 = vmatpush1.msra.mxu0 0.0
    %863 = vmatprep.subr.mxu0 0.0
    %864 = vmatpush1.msra.mxu0 0.0
    %865 = vmatprep.subr.mxu0 0.0
    %866 = vmatpush1.msra.mxu0 0.0
    %867 = vmatprep.subr.mxu0 0.0
    %868 = vmatpush1.msra.mxu0 0.0
    %869 = vmatprep.subr.mxu0 0.0
    %870 = vmatpush1.msra.mxu0 0.0
    %871 = vmatprep.subr.mxu0 0.0
    %872 = vmatpush1.msra.mxu0 0.0
    %873 = vmatprep.subr.mxu0 0.0
    %874 = vmatpush1.msra.mxu0 0.0
    %875 = vmatprep.subr.mxu0 0.0
    %876 = vmatpush1.msra.mxu0 0.0
    %877 = vmatprep.subr.mxu0 0.0
    %878 = vmatpush1.msra.mxu0 %v842
    %879 = vmatprep.subr.mxu0 0.0
    %880 = vmatpush2.msra.mxu0 0.0
    %881 = vmatprep.subr.mxu0 0.0
    %882 = vmatpush2.msra.mxu0 0.0
    %883 = vmatprep.subr.mxu0 0.0
    %884 = vmatpush2.msra.mxu0 0.0
    %885 = vmatprep.subr.mxu0 0.0
    %886 = vmatpush2.msra.mxu0 0.0
    %887 = vmatprep.subr.mxu0 0.0
    %888 = vmatpush2.msra.mxu0 0.0
    %889 = vmatprep.subr.mxu0 0.0
    %890 = vmatpush2.msra.mxu0 0.0
    %891 = vmatprep.subr.mxu0 0.0
    %892 = vmatpush2.msra.mxu0 0.0
    %893 = vmatprep.subr.mxu0 0.0
    %894 = vmatpush2.msra.mxu0 0.0
    %895 = vmatprep.subr.mxu0 0.0
    %896 = vmatpush2.msra.mxu0 0.0
    %897 = vmatprep.subr.mxu0 0.0
    %898 = vmatpush2.msra.mxu0 0.0
    %899 = vmatprep.subr.mxu0 0.0
    %900 = vmatpush2.msra.mxu0 0.0
    %901 = vmatprep.subr.mxu0 0.0
    %902 = vmatpush2.msra.mxu0 0.0
    %903 = vmatprep.subr.mxu0 0.0
    %904 = vmatpush2.msra.mxu0 0.0
    %905 = vmatprep.subr.mxu0 0.0
    %906 = vmatpush2.msra.mxu0 0.0
    %907 = vmatprep.subr.mxu0 0.0
    %908 = vmatpush2.msra.mxu0 0.0
    %909 = vmatprep.subr.mxu0 0.0
    %910 = vmatpush2.msra.mxu0 0.0
    %911 = vmatprep.mubr.f32.mxu0 0.0
    %912 = vmatmul.mubr.f32.gmra.mxu0 %v845
    %v913 = vpop.f32.mrf.mxu0
    %v914 = vadd.f32 0.0, %v913
    %v915 = vpop.f32.mrf.mxu0
    %916 = vdwg.mxu0
    %917 = vrot.lane.b32.xlu0 %v228, 104
    %v918 = vpop.permute.xlu0 %917
    %919 = vrot.lane.b32.xlu0 %v320, 104
    %v920 = vpop.permute.xlu0 %919
    %v921 = vsel %vm420, %v918, 0
    %v923 = vsel %vm420, %v920, 0
    %925 = vmatprep.subr.mxu0 0.0
    %926 = vmatpush1.xpose.msra.mxu0 0.0
    %927 = vmatprep.subr.mxu0 0.0
    %928 = vmatpush1.xpose.msra.mxu0 0.0
    %929 = vmatprep.subr.mxu0 0.0
    %930 = vmatpush1.xpose.msra.mxu0 0.0
    %931 = vmatprep.subr.mxu0 0.0
    %932 = vmatpush1.xpose.msra.mxu0 0.0
    %933 = vmatprep.subr.mxu0 0.0
    %934 = vmatpush1.xpose.msra.mxu0 0.0
    %935 = vmatprep.subr.mxu0 0.0
    %936 = vmatpush1.xpose.msra.mxu0 0.0
    %937 = vmatprep.subr.mxu0 0.0
    %938 = vmatpush1.xpose.msra.mxu0 0.0
    %939 = vmatprep.subr.mxu0 0.0
    %940 = vmatpush1.xpose.msra.mxu0 0.0
    %941 = vmatprep.subr.mxu0 0.0
    %942 = vmatpush1.xpose.msra.mxu0 0.0
    %943 = vmatprep.subr.mxu0 0.0
    %944 = vmatpush1.xpose.msra.mxu0 0.0
    %945 = vmatprep.subr.mxu0 0.0
    %946 = vmatpush1.xpose.msra.mxu0 0.0
    %947 = vmatprep.subr.mxu0 0.0
    %948 = vmatpush1.xpose.msra.mxu0 0.0
    %949 = vmatprep.subr.mxu0 0.0
    %950 = vmatpush1.xpose.msra.mxu0 0.0
    %951 = vmatprep.subr.mxu0 0.0
    %952 = vmatpush1.xpose.msra.mxu0 0.0
    %953 = vmatprep.subr.mxu0 0.0
    %954 = vmatpush1.xpose.msra.mxu0 0.0
    %955 = vmatprep.subr.mxu0 0.0
    %956 = vmatpush1.xpose.msra.mxu0 %v923
    %957 = vmatprep.subr.mxu0 0.0
    %958 = vmatpush2.xpose.msra.mxu0 0.0
    %959 = vmatprep.subr.mxu0 0.0
    %960 = vmatpush2.xpose.msra.mxu0 0.0
    %961 = vmatprep.subr.mxu0 0.0
    %962 = vmatpush2.xpose.msra.mxu0 0.0
    %963 = vmatprep.subr.mxu0 0.0
    %964 = vmatpush2.xpose.msra.mxu0 0.0
    %965 = vmatprep.subr.mxu0 0.0
    %966 = vmatpush2.xpose.msra.mxu0 0.0
    %967 = vmatprep.subr.mxu0 0.0
    %968 = vmatpush2.xpose.msra.mxu0 0.0
    %969 = vmatprep.subr.mxu0 0.0
    %970 = vmatpush2.xpose.msra.mxu0 0.0
    %971 = vmatprep.subr.mxu0 0.0
    %972 = vmatpush2.xpose.msra.mxu0 0.0
    %973 = vmatprep.subr.mxu0 0.0
    %974 = vmatpush2.xpose.msra.mxu0 0.0
    %975 = vmatprep.subr.mxu0 0.0
    %976 = vmatpush2.xpose.msra.mxu0 0.0
    %977 = vmatprep.subr.mxu0 0.0
    %978 = vmatpush2.xpose.msra.mxu0 0.0
    %979 = vmatprep.subr.mxu0 0.0
    %980 = vmatpush2.xpose.msra.mxu0 0.0
    %981 = vmatprep.subr.mxu0 0.0
    %982 = vmatpush2.xpose.msra.mxu0 0.0
    %983 = vmatprep.subr.mxu0 0.0
    %984 = vmatpush2.xpose.msra.mxu0 0.0
    %985 = vmatprep.subr.mxu0 0.0
    %986 = vmatpush2.xpose.msra.mxu0 0.0
    %987 = vmatprep.subr.mxu0 0.0
    %988 = vmatpush2.xpose.msra.mxu0 0.0
    %989 = vmatprep.mubr.f32.mxu0 0.0
    %990 = vmatmul.mubr.f32.gmra.mxu0 %v921
    %v991 = vpop.f32.mrf.mxu0
    %v992 = vadd.f32 0.0, %v991
    %v993 = vpop.f32.mrf.mxu0
    %994 = vdwg.mxu0
    %v995 = vsel %vm420, %v992, -inf
    %996 = vmax.xlane.f32.xlu0 %v995
    %v997 = vpop.xlane.xlu0 %996
    %v998 = vsub.f32 %v992, %v997
    %v999 = vmul.f32 %v998, 1.442695
    %v1000 = vpow.pop %v999
    %v1001 = vsel %vm420, %v1000, 0.0
    %1002 = vadd.xlane.f32.xlu0 %v1001
    %v1003 = vpop.xlane.xlu0 %1002
    %v1004 = vrcp.pop %v1003
    %v1005 = vmul.f32 %v1000, %v1004
    %s1006 = scalar_lea.vmem [#allocation15], 24
    %1007 = vst.msk [vmem:[%s1006] sm:$0xff] %vm420, %v1005
    %1008 = vrot.lane.b32.xlu0 %v412, 104
    %v1009 = vpop.permute.xlu0 %1008
    %v1012 = vsel %vm420, %v1005, 0
    %1014 = vmatprep.subr.mxu0 0.0
    %1015 = vmatpush1.msra.mxu0 0.0
    %1016 = vmatprep.subr.mxu0 0.0
    %1017 = vmatpush1.msra.mxu0 0.0
    %1018 = vmatprep.subr.mxu0 0.0
    %1019 = vmatpush1.msra.mxu0 0.0
    %1020 = vmatprep.subr.mxu0 0.0
    %1021 = vmatpush1.msra.mxu0 0.0
    %1022 = vmatprep.subr.mxu0 0.0
    %1023 = vmatpush1.msra.mxu0 0.0
    %1024 = vmatprep.subr.mxu0 0.0
    %1025 = vmatpush1.msra.mxu0 0.0
    %1026 = vmatprep.subr.mxu0 0.0
    %1027 = vmatpush1.msra.mxu0 0.0
    %1028 = vmatprep.subr.mxu0 0.0
    %1029 = vmatpush1.msra.mxu0 0.0
    %1030 = vmatprep.subr.mxu0 0.0
    %1031 = vmatpush1.msra.mxu0 0.0
    %1032 = vmatprep.subr.mxu0 0.0
    %1033 = vmatpush1.msra.mxu0 0.0
    %1034 = vmatprep.subr.mxu0 0.0
    %1035 = vmatpush1.msra.mxu0 0.0
    %1036 = vmatprep.subr.mxu0 0.0
    %1037 = vmatpush1.msra.mxu0 0.0
    %1038 = vmatprep.subr.mxu0 0.0
    %1039 = vmatpush1.msra.mxu0 0.0
    %1040 = vmatprep.subr.mxu0 0.0
    %1041 = vmatpush1.msra.mxu0 0.0
    %1042 = vmatprep.subr.mxu0 0.0
    %1043 = vmatpush1.msra.mxu0 0.0
    %1044 = vmatprep.subr.mxu0 0.0
    %1045 = vmatpush1.msra.mxu0 %v1009
    %1046 = vmatprep.subr.mxu0 0.0
    %1047 = vmatpush2.msra.mxu0 0.0
    %1048 = vmatprep.subr.mxu0 0.0
    %1049 = vmatpush2.msra.mxu0 0.0
    %1050 = vmatprep.subr.mxu0 0.0
    %1051 = vmatpush2.msra.mxu0 0.0
    %1052 = vmatprep.subr.mxu0 0.0
    %1053 = vmatpush2.msra.mxu0 0.0
    %1054 = vmatprep.subr.mxu0 0.0
    %1055 = vmatpush2.msra.mxu0 0.0
    %1056 = vmatprep.subr.mxu0 0.0
    %1057 = vmatpush2.msra.mxu0 0.0
    %1058 = vmatprep.subr.mxu0 0.0
    %1059 = vmatpush2.msra.mxu0 0.0
    %1060 = vmatprep.subr.mxu0 0.0
    %1061 = vmatpush2.msra.mxu0 0.0
    %1062 = vmatprep.subr.mxu0 0.0
    %1063 = vmatpush2.msra.mxu0 0.0
    %1064 = vmatprep.subr.mxu0 0.0
    %1065 = vmatpush2.msra.mxu0 0.0
    %1066 = vmatprep.subr.mxu0 0.0
    %1067 = vmatpush2.msra.mxu0 0.0
    %1068 = vmatprep.subr.mxu0 0.0
    %1069 = vmatpush2.msra.mxu0 0.0
    %1070 = vmatprep.subr.mxu0 0.0
    %1071 = vmatpush2.msra.mxu0 0.0
    %1072 = vmatprep.subr.mxu0 0.0
    %1073 = vmatpush2.msra.mxu0 0.0
    %1074 = vmatprep.subr.mxu0 0.0
    %1075 = vmatpush2.msra.mxu0 0.0
    %1076 = vmatprep.subr.mxu0 0.0
    %1077 = vmatpush2.msra.mxu0 0.0
    %1078 = vmatprep.mubr.f32.mxu0 0.0
    %1079 = vmatmul.mubr.f32.gmra.mxu0 %v1012
    %v1080 = vpop.f32.mrf.mxu0
    %v1081 = vadd.f32 0.0, %v1080
    %v1082 = vpop.f32.mrf.mxu0
    %1083 = vdwg.mxu0
    %1085 = vrot.lane.b32.xlu0 %v747, 8
    %v1086 = vpop.permute.xlu0 %1085
    %1089 = vrot.lane.b32.xlu0 %v914, 16
    %v1090 = vpop.permute.xlu0 %1089
    %1093 = vrot.lane.b32.xlu0 %v1081, 24
    %v1094 = vpop.permute.xlu0 %1093
    %v1096 = vsel %vm420, %v579, %v1086
    %vm1097 = vcmask 130048
    %v1098 = vsel %vm1097, %v1096, %v1090
    %vm1099 = vcmask 195584
    %v1100 = vsel %vm1099, %v1098, %v1094
    %v1102 = vsel %vm420, %v233, 0
    %v1105 = vsel %vm420, %v325, 0
    %1107 = vmatprep.subr.mxu0 0.0
    %1108 = vmatpush1.xpose.msra.mxu0 0.0
    %1109 = vmatprep.subr.mxu0 0.0
    %1110 = vmatpush1.xpose.msra.mxu0 0.0
    %1111 = vmatprep.subr.mxu0 0.0
    %1112 = vmatpush1.xpose.msra.mxu0 0.0
    %1113 = vmatprep.subr.mxu0 0.0
    %1114 = vmatpush1.xpose.msra.mxu0 0.0
    %1115 = vmatprep.subr.mxu0 0.0
    %1116 = vmatpush1.xpose.msra.mxu0 0.0
    %1117 = vmatprep.subr.mxu0 0.0
    %1118 = vmatpush1.xpose.msra.mxu0 0.0
    %1119 = vmatprep.subr.mxu0 0.0
    %1120 = vmatpush1.xpose.msra.mxu0 0.0
    %1121 = vmatprep.subr.mxu0 0.0
    %1122 = vmatpush1.xpose.msra.mxu0 0.0
    %1123 = vmatprep.subr.mxu0 0.0
    %1124 = vmatpush1.xpose.msra.mxu0 0.0
    %1125 = vmatprep.subr.mxu0 0.0
    %1126 = vmatpush1.xpose.msra.mxu0 0.0
    %1127 = vmatprep.subr.mxu0 0.0
    %1128 = vmatpush1.xpose.msra.mxu0 0.0
    %1129 = vmatprep.subr.mxu0 0.0
    %1130 = vmatpush1.xpose.msra.mxu0 0.0
    %1131 = vmatprep.subr.mxu0 0.0
    %1132 = vmatpush1.xpose.msra.mxu0 0.0
    %1133 = vmatprep.subr.mxu0 0.0
    %1134 = vmatpush1.xpose.msra.mxu0 0.0
    %1135 = vmatprep.subr.mxu0 0.0
    %1136 = vmatpush1.xpose.msra.mxu0 0.0
    %1137 = vmatprep.subr.mxu0 0.0
    %1138 = vmatpush1.xpose.msra.mxu0 %v1105
    %1139 = vmatprep.subr.mxu0 0.0
    %1140 = vmatpush2.xpose.msra.mxu0 0.0
    %1141 = vmatprep.subr.mxu0 0.0
    %1142 = vmatpush2.xpose.msra.mxu0 0.0
    %1143 = vmatprep.subr.mxu0 0.0
    %1144 = vmatpush2.xpose.msra.mxu0 0.0
    %1145 = vmatprep.subr.mxu0 0.0
    %1146 = vmatpush2.xpose.msra.mxu0 0.0
    %1147 = vmatprep.subr.mxu0 0.0
    %1148 = vmatpush2.xpose.msra.mxu0 0.0
    %1149 = vmatprep.subr.mxu0 0.0
    %1150 = vmatpush2.xpose.msra.mxu0 0.0
    %1151 = vmatprep.subr.mxu0 0.0
    %1152 = vmatpush2.xpose.msra.mxu0 0.0
    %1153 = vmatprep.subr.mxu0 0.0
    %1154 = vmatpush2.xpose.msra.mxu0 0.0
    %1155 = vmatprep.subr.mxu0 0.0
    %1156 = vmatpush2.xpose.msra.mxu0 0.0
    %1157 = vmatprep.subr.mxu0 0.0
    %1158 = vmatpush2.xpose.msra.mxu0 0.0
    %1159 = vmatprep.subr.mxu0 0.0
    %1160 = vmatpush2.xpose.msra.mxu0 0.0
    %1161 = vmatprep.subr.mxu0 0.0
    %1162 = vmatpush2.xpose.msra.mxu0 0.0
    %1163 = vmatprep.subr.mxu0 0.0
    %1164 = vmatpush2.xpose.msra.mxu0 0.0
    %1165 = vmatprep.subr.mxu0 0.0
    %1166 = vmatpush2.xpose.msra.mxu0 0.0
    %1167 = vmatprep.subr.mxu0 0.0
    %1168 = vmatpush2.xpose.msra.mxu0 0.0
    %1169 = vmatprep.subr.mxu0 0.0
    %1170 = vmatpush2.xpose.msra.mxu0 0.0
    %1171 = vmatprep.mubr.f32.mxu0 0.0
    %1172 = vmatmul.mubr.f32.gmra.mxu0 %v1102
    %v1173 = vpop.f32.mrf.mxu0
    %v1174 = vadd.f32 0.0, %v1173
    %v1175 = vpop.f32.mrf.mxu0
    %1176 = vdwg.mxu0
    %v1177 = vsel %vm420, %v1174, -inf
    %1178 = vmax.xlane.f32.xlu0 %v1177
    %v1179 = vpop.xlane.xlu0 %1178
    %v1180 = vsub.f32 %v1174, %v1179
    %v1181 = vmul.f32 %v1180, 1.442695
    %v1182 = vpow.pop %v1181
    %v1183 = vsel %vm420, %v1182, 0.0
    %1184 = vadd.xlane.f32.xlu0 %v1183
    %v1185 = vpop.xlane.xlu0 %1184
    %v1186 = vrcp.pop %v1185
    %v1187 = vmul.f32 %v1182, %v1186
    %s1188 = scalar_lea.vmem [#allocation15], 32
    %1189 = vst.msk [vmem:[%s1188] sm:$0xff] %vm420, %v1187
    %v1191 = vsel %vm420, %v1187, 0
    %1193 = vmatprep.subr.mxu0 0.0
    %1194 = vmatpush1.msra.mxu0 0.0
    %1195 = vmatprep.subr.mxu0 0.0
    %1196 = vmatpush1.msra.mxu0 0.0
    %1197 = vmatprep.subr.mxu0 0.0
    %1198 = vmatpush1.msra.mxu0 0.0
    %1199 = vmatprep.subr.mxu0 0.0
    %1200 = vmatpush1.msra.mxu0 0.0
    %1201 = vmatprep.subr.mxu0 0.0
    %1202 = vmatpush1.msra.mxu0 0.0
    %1203 = vmatprep.subr.mxu0 0.0
    %1204 = vmatpush1.msra.mxu0 0.0
    %1205 = vmatprep.subr.mxu0 0.0
    %1206 = vmatpush1.msra.mxu0 0.0
    %1207 = vmatprep.subr.mxu0 0.0
    %1208 = vmatpush1.msra.mxu0 0.0
    %1209 = vmatprep.subr.mxu0 0.0
    %1210 = vmatpush1.msra.mxu0 0.0
    %1211 = vmatprep.subr.mxu0 0.0
    %1212 = vmatpush1.msra.mxu0 0.0
    %1213 = vmatprep.subr.mxu0 0.0
    %1214 = vmatpush1.msra.mxu0 0.0
    %1215 = vmatprep.subr.mxu0 0.0
    %1216 = vmatpush1.msra.mxu0 0.0
    %1217 = vmatprep.subr.mxu0 0.0
    %1218 = vmatpush1.msra.mxu0 0.0
    %1219 = vmatprep.subr.mxu0 0.0
    %1220 = vmatpush1.msra.mxu0 0.0
    %1221 = vmatprep.subr.mxu0 0.0
    %1222 = vmatpush1.msra.mxu0 0.0
    %1223 = vmatprep.subr.mxu0 0.0
    %1224 = vmatpush1.msra.mxu0 %v417
    %1225 = vmatprep.subr.mxu0 0.0
    %1226 = vmatpush2.msra.mxu0 0.0
    %1227 = vmatprep.subr.mxu0 0.0
    %1228 = vmatpush2.msra.mxu0 0.0
    %1229 = vmatprep.subr.mxu0 0.0
    %1230 = vmatpush2.msra.mxu0 0.0
    %1231 = vmatprep.subr.mxu0 0.0
    %1232 = vmatpush2.msra.mxu0 0.0
    %1233 = vmatprep.subr.mxu0 0.0
    %1234 = vmatpush2.msra.mxu0 0.0
    %1235 = vmatprep.subr.mxu0 0.0
    %1236 = vmatpush2.msra.mxu0 0.0
    %1237 = vmatprep.subr.mxu0 0.0
    %1238 = vmatpush2.msra.mxu0 0.0
    %1239 = vmatprep.subr.mxu0 0.0
    %1240 = vmatpush2.msra.mxu0 0.0
    %1241 = vmatprep.subr.mxu0 0.0
    %1242 = vmatpush2.msra.mxu0 0.0
    %1243 = vmatprep.subr.mxu0 0.0
    %1244 = vmatpush2.msra.mxu0 0.0
    %1245 = vmatprep.subr.mxu0 0.0
    %1246 = vmatpush2.msra.mxu0 0.0
    %1247 = vmatprep.subr.mxu0 0.0
    %1248 = vmatpush2.msra.mxu0 0.0
    %1249 = vmatprep.subr.mxu0 0.0
    %1250 = vmatpush2.msra.mxu0 0.0
    %1251 = vmatprep.subr.mxu0 0.0
    %1252 = vmatpush2.msra.mxu0 0.0
    %1253 = vmatprep.subr.mxu0 0.0
    %1254 = vmatpush2.msra.mxu0 0.0
    %1255 = vmatprep.subr.mxu0 0.0
    %1256 = vmatpush2.msra.mxu0 0.0
    %1257 = vmatprep.mubr.f32.mxu0 0.0
    %1258 = vmatmul.mubr.f32.gmra.mxu0 %v1191
    %v1259 = vpop.f32.mrf.mxu0
    %v1260 = vadd.f32 0.0, %v1259
    %v1261 = vpop.f32.mrf.mxu0
    %1262 = vdwg.mxu0
    %1263 = vrot.lane.b32.xlu0 %v233, 120
    %v1264 = vpop.permute.xlu0 %1263
    %1265 = vrot.lane.b32.xlu0 %v325, 120
    %v1266 = vpop.permute.xlu0 %1265
    %v1267 = vsel %vm420, %v1264, 0
    %v1269 = vsel %vm420, %v1266, 0
    %1271 = vmatprep.subr.mxu0 0.0
    %1272 = vmatpush1.xpose.msra.mxu0 0.0
    %1273 = vmatprep.subr.mxu0 0.0
    %1274 = vmatpush1.xpose.msra.mxu0 0.0
    %1275 = vmatprep.subr.mxu0 0.0
    %1276 = vmatpush1.xpose.msra.mxu0 0.0
    %1277 = vmatprep.subr.mxu0 0.0
    %1278 = vmatpush1.xpose.msra.mxu0 0.0
    %1279 = vmatprep.subr.mxu0 0.0
    %1280 = vmatpush1.xpose.msra.mxu0 0.0
    %1281 = vmatprep.subr.mxu0 0.0
    %1282 = vmatpush1.xpose.msra.mxu0 0.0
    %1283 = vmatprep.subr.mxu0 0.0
    %1284 = vmatpush1.xpose.msra.mxu0 0.0
    %1285 = vmatprep.subr.mxu0 0.0
    %1286 = vmatpush1.xpose.msra.mxu0 0.0
    %1287 = vmatprep.subr.mxu0 0.0
    %1288 = vmatpush1.xpose.msra.mxu0 0.0
    %1289 = vmatprep.subr.mxu0 0.0
    %1290 = vmatpush1.xpose.msra.mxu0 0.0
    %1291 = vmatprep.subr.mxu0 0.0
    %1292 = vmatpush1.xpose.msra.mxu0 0.0
    %1293 = vmatprep.subr.mxu0 0.0
    %1294 = vmatpush1.xpose.msra.mxu0 0.0
    %1295 = vmatprep.subr.mxu0 0.0
    %1296 = vmatpush1.xpose.msra.mxu0 0.0
    %1297 = vmatprep.subr.mxu0 0.0
    %1298 = vmatpush1.xpose.msra.mxu0 0.0
    %1299 = vmatprep.subr.mxu0 0.0
    %1300 = vmatpush1.xpose.msra.mxu0 0.0
    %1301 = vmatprep.subr.mxu0 0.0
    %1302 = vmatpush1.xpose.msra.mxu0 %v1269
    %1303 = vmatprep.subr.mxu0 0.0
    %1304 = vmatpush2.xpose.msra.mxu0 0.0
    %1305 = vmatprep.subr.mxu0 0.0
    %1306 = vmatpush2.xpose.msra.mxu0 0.0
    %1307 = vmatprep.subr.mxu0 0.0
    %1308 = vmatpush2.xpose.msra.mxu0 0.0
    %1309 = vmatprep.subr.mxu0 0.0
    %1310 = vmatpush2.xpose.msra.mxu0 0.0
    %1311 = vmatprep.subr.mxu0 0.0
    %1312 = vmatpush2.xpose.msra.mxu0 0.0
    %1313 = vmatprep.subr.mxu0 0.0
    %1314 = vmatpush2.xpose.msra.mxu0 0.0
    %1315 = vmatprep.subr.mxu0 0.0
    %1316 = vmatpush2.xpose.msra.mxu0 0.0
    %1317 = vmatprep.subr.mxu0 0.0
    %1318 = vmatpush2.xpose.msra.mxu0 0.0
    %1319 = vmatprep.subr.mxu0 0.0
    %1320 = vmatpush2.xpose.msra.mxu0 0.0
    %1321 = vmatprep.subr.mxu0 0.0
    %1322 = vmatpush2.xpose.msra.mxu0 0.0
    %1323 = vmatprep.subr.mxu0 0.0
    %1324 = vmatpush2.xpose.msra.mxu0 0.0
    %1325 = vmatprep.subr.mxu0 0.0
    %1326 = vmatpush2.xpose.msra.mxu0 0.0
    %1327 = vmatprep.subr.mxu0 0.0
    %1328 = vmatpush2.xpose.msra.mxu0 0.0
    %1329 = vmatprep.subr.mxu0 0.0
    %1330 = vmatpush2.xpose.msra.mxu0 0.0
    %1331 = vmatprep.subr.mxu0 0.0
    %1332 = vmatpush2.xpose.msra.mxu0 0.0
    %1333 = vmatprep.subr.mxu0 0.0
    %1334 = vmatpush2.xpose.msra.mxu0 0.0
    %1335 = vmatprep.mubr.f32.mxu0 0.0
    %1336 = vmatmul.mubr.f32.gmra.mxu0 %v1267
    %v1337 = vpop.f32.mrf.mxu0
    %v1338 = vadd.f32 0.0, %v1337
    %v1339 = vpop.f32.mrf.mxu0
    %1340 = vdwg.mxu0
    %v1341 = vsel %vm420, %v1338, -inf
    %1342 = vmax.xlane.f32.xlu0 %v1341
    %v1343 = vpop.xlane.xlu0 %1342
    %v1344 = vsub.f32 %v1338, %v1343
    %v1345 = vmul.f32 %v1344, 1.442695
    %v1346 = vpow.pop %v1345
    %v1347 = vsel %vm420, %v1346, 0.0
    %1348 = vadd.xlane.f32.xlu0 %v1347
    %v1349 = vpop.xlane.xlu0 %1348
    %v1350 = vrcp.pop %v1349
    %v1351 = vmul.f32 %v1346, %v1350
    %s1352 = scalar_lea.vmem [#allocation15], 40
    %1353 = vst.msk [vmem:[%s1352] sm:$0xff] %vm420, %v1351
    %1355 = vrot.lane.b32.xlu0 %v417, 120
    %v1356 = vpop.permute.xlu0 %1355
    %v1359 = vsel %vm420, %v1351, 0
    %1361 = vmatprep.subr.mxu0 0.0
    %1362 = vmatpush1.msra.mxu0 0.0
    %1363 = vmatprep.subr.mxu0 0.0
    %1364 = vmatpush1.msra.mxu0 0.0
    %1365 = vmatprep.subr.mxu0 0.0
    %1366 = vmatpush1.msra.mxu0 0.0
    %1367 = vmatprep.subr.mxu0 0.0
    %1368 = vmatpush1.msra.mxu0 0.0
    %1369 = vmatprep.subr.mxu0 0.0
    %1370 = vmatpush1.msra.mxu0 0.0
    %1371 = vmatprep.subr.mxu0 0.0
    %1372 = vmatpush1.msra.mxu0 0.0
    %1373 = vmatprep.subr.mxu0 0.0
    %1374 = vmatpush1.msra.mxu0 0.0
    %1375 = vmatprep.subr.mxu0 0.0
    %1376 = vmatpush1.msra.mxu0 0.0
    %1377 = vmatprep.subr.mxu0 0.0
    %1378 = vmatpush1.msra.mxu0 0.0
    %1379 = vmatprep.subr.mxu0 0.0
    %1380 = vmatpush1.msra.mxu0 0.0
    %1381 = vmatprep.subr.mxu0 0.0
    %1382 = vmatpush1.msra.mxu0 0.0
    %1383 = vmatprep.subr.mxu0 0.0
    %1384 = vmatpush1.msra.mxu0 0.0
    %1385 = vmatprep.subr.mxu0 0.0
    %1386 = vmatpush1.msra.mxu0 0.0
    %1387 = vmatprep.subr.mxu0 0.0
    %1388 = vmatpush1.msra.mxu0 0.0
    %1389 = vmatprep.subr.mxu0 0.0
    %1390 = vmatpush1.msra.mxu0 0.0
    %1391 = vmatprep.subr.mxu0 0.0
    %1392 = vmatpush1.msra.mxu0 %v1356
    %1393 = vmatprep.subr.mxu0 0.0
    %1394 = vmatpush2.msra.mxu0 0.0
    %1395 = vmatprep.subr.mxu0 0.0
    %1396 = vmatpush2.msra.mxu0 0.0
    %1397 = vmatprep.subr.mxu0 0.0
    %1398 = vmatpush2.msra.mxu0 0.0
    %1399 = vmatprep.subr.mxu0 0.0
    %1400 = vmatpush2.msra.mxu0 0.0
    %1401 = vmatprep.subr.mxu0 0.0
    %1402 = vmatpush2.msra.mxu0 0.0
    %1403 = vmatprep.subr.mxu0 0.0
    %1404 = vmatpush2.msra.mxu0 0.0
    %1405 = vmatprep.subr.mxu0 0.0
    %1406 = vmatpush2.msra.mxu0 0.0
    %1407 = vmatprep.subr.mxu0 0.0
    %1408 = vmatpush2.msra.mxu0 0.0
    %1409 = vmatprep.subr.mxu0 0.0
    %1410 = vmatpush2.msra.mxu0 0.0
    %1411 = vmatprep.subr.mxu0 0.0
    %1412 = vmatpush2.msra.mxu0 0.0
    %1413 = vmatprep.subr.mxu0 0.0
    %1414 = vmatpush2.msra.mxu0 0.0
    %1415 = vmatprep.subr.mxu0 0.0
    %1416 = vmatpush2.msra.mxu0 0.0
    %1417 = vmatprep.subr.mxu0 0.0
    %1418 = vmatpush2.msra.mxu0 0.0
    %1419 = vmatprep.subr.mxu0 0.0
    %1420 = vmatpush2.msra.mxu0 0.0
    %1421 = vmatprep.subr.mxu0 0.0
    %1422 = vmatpush2.msra.mxu0 0.0
    %1423 = vmatprep.subr.mxu0 0.0
    %1424 = vmatpush2.msra.mxu0 0.0
    %1425 = vmatprep.mubr.f32.mxu0 0.0
    %1426 = vmatmul.mubr.f32.gmra.mxu0 %v1359
    %v1427 = vpop.f32.mrf.mxu0
    %v1428 = vadd.f32 0.0, %v1427
    %v1429 = vpop.f32.mrf.mxu0
    %1430 = vdwg.mxu0
    %1431 = vrot.lane.b32.xlu0 %v233, 112
    %v1432 = vpop.permute.xlu0 %1431
    %1433 = vrot.lane.b32.xlu0 %v325, 112
    %v1434 = vpop.permute.xlu0 %1433
    %v1435 = vsel %vm420, %v1432, 0
    %v1437 = vsel %vm420, %v1434, 0
    %1439 = vmatprep.subr.mxu0 0.0
    %1440 = vmatpush1.xpose.msra.mxu0 0.0
    %1441 = vmatprep.subr.mxu0 0.0
    %1442 = vmatpush1.xpose.msra.mxu0 0.0
    %1443 = vmatprep.subr.mxu0 0.0
    %1444 = vmatpush1.xpose.msra.mxu0 0.0
    %1445 = vmatprep.subr.mxu0 0.0
    %1446 = vmatpush1.xpose.msra.mxu0 0.0
    %1447 = vmatprep.subr.mxu0 0.0
    %1448 = vmatpush1.xpose.msra.mxu0 0.0
    %1449 = vmatprep.subr.mxu0 0.0
    %1450 = vmatpush1.xpose.msra.mxu0 0.0
    %1451 = vmatprep.subr.mxu0 0.0
    %1452 = vmatpush1.xpose.msra.mxu0 0.0
    %1453 = vmatprep.subr.mxu0 0.0
    %1454 = vmatpush1.xpose.msra.mxu0 0.0
    %1455 = vmatprep.subr.mxu0 0.0
    %1456 = vmatpush1.xpose.msra.mxu0 0.0
    %1457 = vmatprep.subr.mxu0 0.0
    %1458 = vmatpush1.xpose.msra.mxu0 0.0
    %1459 = vmatprep.subr.mxu0 0.0
    %1460 = vmatpush1.xpose.msra.mxu0 0.0
    %1461 = vmatprep.subr.mxu0 0.0
    %1462 = vmatpush1.xpose.msra.mxu0 0.0
    %1463 = vmatprep.subr.mxu0 0.0
    %1464 = vmatpush1.xpose.msra.mxu0 0.0
    %1465 = vmatprep.subr.mxu0 0.0
    %1466 = vmatpush1.xpose.msra.mxu0 0.0
    %1467 = vmatprep.subr.mxu0 0.0
    %1468 = vmatpush1.xpose.msra.mxu0 0.0
    %1469 = vmatprep.subr.mxu0 0.0
    %1470 = vmatpush1.xpose.msra.mxu0 %v1437
    %1471 = vmatprep.subr.mxu0 0.0
    %1472 = vmatpush2.xpose.msra.mxu0 0.0
    %1473 = vmatprep.subr.mxu0 0.0
    %1474 = vmatpush2.xpose.msra.mxu0 0.0
    %1475 = vmatprep.subr.mxu0 0.0
    %1476 = vmatpush2.xpose.msra.mxu0 0.0
    %1477 = vmatprep.subr.mxu0 0.0
    %1478 = vmatpush2.xpose.msra.mxu0 0.0
    %1479 = vmatprep.subr.mxu0 0.0
    %1480 = vmatpush2.xpose.msra.mxu0 0.0
    %1481 = vmatprep.subr.mxu0 0.0
    %1482 = vmatpush2.xpose.msra.mxu0 0.0
    %1483 = vmatprep.subr.mxu0 0.0
    %1484 = vmatpush2.xpose.msra.mxu0 0.0
    %1485 = vmatprep.subr.mxu0 0.0
    %1486 = vmatpush2.xpose.msra.mxu0 0.0
    %1487 = vmatprep.subr.mxu0 0.0
    %1488 = vmatpush2.xpose.msra.mxu0 0.0
    %1489 = vmatprep.subr.mxu0 0.0
    %1490 = vmatpush2.xpose.msra.mxu0 0.0
    %1491 = vmatprep.subr.mxu0 0.0
    %1492 = vmatpush2.xpose.msra.mxu0 0.0
    %1493 = vmatprep.subr.mxu0 0.0
    %1494 = vmatpush2.xpose.msra.mxu0 0.0
    %1495 = vmatprep.subr.mxu0 0.0
    %1496 = vmatpush2.xpose.msra.mxu0 0.0
    %1497 = vmatprep.subr.mxu0 0.0
    %1498 = vmatpush2.xpose.msra.mxu0 0.0
    %1499 = vmatprep.subr.mxu0 0.0
    %1500 = vmatpush2.xpose.msra.mxu0 0.0
    %1501 = vmatprep.subr.mxu0 0.0
    %1502 = vmatpush2.xpose.msra.mxu0 0.0
    %1503 = vmatprep.mubr.f32.mxu0 0.0
    %1504 = vmatmul.mubr.f32.gmra.mxu0 %v1435
    %v1505 = vpop.f32.mrf.mxu0
    %v1506 = vadd.f32 0.0, %v1505
    %v1507 = vpop.f32.mrf.mxu0
    %1508 = vdwg.mxu0
    %v1509 = vsel %vm420, %v1506, -inf
    %1510 = vmax.xlane.f32.xlu0 %v1509
    %v1511 = vpop.xlane.xlu0 %1510
    %v1512 = vsub.f32 %v1506, %v1511
    %v1513 = vmul.f32 %v1512, 1.442695
    %v1514 = vpow.pop %v1513
    %v1515 = vsel %vm420, %v1514, 0.0
    %1516 = vadd.xlane.f32.xlu0 %v1515
    %v1517 = vpop.xlane.xlu0 %1516
    %v1518 = vrcp.pop %v1517
    %v1519 = vmul.f32 %v1514, %v1518
    %s1520 = scalar_lea.vmem [#allocation15], 48
    %1521 = vst.msk [vmem:[%s1520] sm:$0xff] %vm420, %v1519
    %1522 = vrot.lane.b32.xlu0 %v417, 112
    %v1523 = vpop.permute.xlu0 %1522
    %v1526 = vsel %vm420, %v1519, 0
    %1528 = vmatprep.subr.mxu0 0.0
    %1529 = vmatpush1.msra.mxu0 0.0
    %1530 = vmatprep.subr.mxu0 0.0
    %1531 = vmatpush1.msra.mxu0 0.0
    %1532 = vmatprep.subr.mxu0 0.0
    %1533 = vmatpush1.msra.mxu0 0.0
    %1534 = vmatprep.subr.mxu0 0.0
    %1535 = vmatpush1.msra.mxu0 0.0
    %1536 = vmatprep.subr.mxu0 0.0
    %1537 = vmatpush1.msra.mxu0 0.0
    %1538 = vmatprep.subr.mxu0 0.0
    %1539 = vmatpush1.msra.mxu0 0.0
    %1540 = vmatprep.subr.mxu0 0.0
    %1541 = vmatpush1.msra.mxu0 0.0
    %1542 = vmatprep.subr.mxu0 0.0
    %1543 = vmatpush1.msra.mxu0 0.0
    %1544 = vmatprep.subr.mxu0 0.0
    %1545 = vmatpush1.msra.mxu0 0.0
    %1546 = vmatprep.subr.mxu0 0.0
    %1547 = vmatpush1.msra.mxu0 0.0
    %1548 = vmatprep.subr.mxu0 0.0
    %1549 = vmatpush1.msra.mxu0 0.0
    %1550 = vmatprep.subr.mxu0 0.0
    %1551 = vmatpush1.msra.mxu0 0.0
    %1552 = vmatprep.subr.mxu0 0.0
    %1553 = vmatpush1.msra.mxu0 0.0
    %1554 = vmatprep.subr.mxu0 0.0
    %1555 = vmatpush1.msra.mxu0 0.0
    %1556 = vmatprep.subr.mxu0 0.0
    %1557 = vmatpush1.msra.mxu0 0.0
    %1558 = vmatprep.subr.mxu0 0.0
    %1559 = vmatpush1.msra.mxu0 %v1523
    %1560 = vmatprep.subr.mxu0 0.0
    %1561 = vmatpush2.msra.mxu0 0.0
    %1562 = vmatprep.subr.mxu0 0.0
    %1563 = vmatpush2.msra.mxu0 0.0
    %1564 = vmatprep.subr.mxu0 0.0
    %1565 = vmatpush2.msra.mxu0 0.0
    %1566 = vmatprep.subr.mxu0 0.0
    %1567 = vmatpush2.msra.mxu0 0.0
    %1568 = vmatprep.subr.mxu0 0.0
    %1569 = vmatpush2.msra.mxu0 0.0
    %1570 = vmatprep.subr.mxu0 0.0
    %1571 = vmatpush2.msra.mxu0 0.0
    %1572 = vmatprep.subr.mxu0 0.0
    %1573 = vmatpush2.msra.mxu0 0.0
    %1574 = vmatprep.subr.mxu0 0.0
    %1575 = vmatpush2.msra.mxu0 0.0
    %1576 = vmatprep.subr.mxu0 0.0
    %1577 = vmatpush2.msra.mxu0 0.0
    %1578 = vmatprep.subr.mxu0 0.0
    %1579 = vmatpush2.msra.mxu0 0.0
    %1580 = vmatprep.subr.mxu0 0.0
    %1581 = vmatpush2.msra.mxu0 0.0
    %1582 = vmatprep.subr.mxu0 0.0
    %1583 = vmatpush2.msra.mxu0 0.0
    %1584 = vmatprep.subr.mxu0 0.0
    %1585 = vmatpush2.msra.mxu0 0.0
    %1586 = vmatprep.subr.mxu0 0.0
    %1587 = vmatpush2.msra.mxu0 0.0
    %1588 = vmatprep.subr.mxu0 0.0
    %1589 = vmatpush2.msra.mxu0 0.0
    %1590 = vmatprep.subr.mxu0 0.0
    %1591 = vmatpush2.msra.mxu0 0.0
    %1592 = vmatprep.mubr.f32.mxu0 0.0
    %1593 = vmatmul.mubr.f32.gmra.mxu0 %v1526
    %v1594 = vpop.f32.mrf.mxu0
    %v1595 = vadd.f32 0.0, %v1594
    %v1596 = vpop.f32.mrf.mxu0
    %1597 = vdwg.mxu0
    %1598 = vrot.lane.b32.xlu0 %v233, 104
    %v1599 = vpop.permute.xlu0 %1598
    %1600 = vrot.lane.b32.xlu0 %v325, 104
    %v1601 = vpop.permute.xlu0 %1600
    %v1602 = vsel %vm420, %v1599, 0
    %v1604 = vsel %vm420, %v1601, 0
    %1606 = vmatprep.subr.mxu0 0.0
    %1607 = vmatpush1.xpose.msra.mxu0 0.0
    %1608 = vmatprep.subr.mxu0 0.0
    %1609 = vmatpush1.xpose.msra.mxu0 0.0
    %1610 = vmatprep.subr.mxu0 0.0
    %1611 = vmatpush1.xpose.msra.mxu0 0.0
    %1612 = vmatprep.subr.mxu0 0.0
    %1613 = vmatpush1.xpose.msra.mxu0 0.0
    %1614 = vmatprep.subr.mxu0 0.0
    %1615 = vmatpush1.xpose.msra.mxu0 0.0
    %1616 = vmatprep.subr.mxu0 0.0
    %1617 = vmatpush1.xpose.msra.mxu0 0.0
    %1618 = vmatprep.subr.mxu0 0.0
    %1619 = vmatpush1.xpose.msra.mxu0 0.0
    %1620 = vmatprep.subr.mxu0 0.0
    %1621 = vmatpush1.xpose.msra.mxu0 0.0
    %1622 = vmatprep.subr.mxu0 0.0
    %1623 = vmatpush1.xpose.msra.mxu0 0.0
    %1624 = vmatprep.subr.mxu0 0.0
    %1625 = vmatpush1.xpose.msra.mxu0 0.0
    %1626 = vmatprep.subr.mxu0 0.0
    %1627 = vmatpush1.xpose.msra.mxu0 0.0
    %1628 = vmatprep.subr.mxu0 0.0
    %1629 = vmatpush1.xpose.msra.mxu0 0.0
    %1630 = vmatprep.subr.mxu0 0.0
    %1631 = vmatpush1.xpose.msra.mxu0 0.0
    %1632 = vmatprep.subr.mxu0 0.0
    %1633 = vmatpush1.xpose.msra.mxu0 0.0
    %1634 = vmatprep.subr.mxu0 0.0
    %1635 = vmatpush1.xpose.msra.mxu0 0.0
    %1636 = vmatprep.subr.mxu0 0.0
    %1637 = vmatpush1.xpose.msra.mxu0 %v1604
    %1638 = vmatprep.subr.mxu0 0.0
    %1639 = vmatpush2.xpose.msra.mxu0 0.0
    %1640 = vmatprep.subr.mxu0 0.0
    %1641 = vmatpush2.xpose.msra.mxu0 0.0
    %1642 = vmatprep.subr.mxu0 0.0
    %1643 = vmatpush2.xpose.msra.mxu0 0.0
    %1644 = vmatprep.subr.mxu0 0.0
    %1645 = vmatpush2.xpose.msra.mxu0 0.0
    %1646 = vmatprep.subr.mxu0 0.0
    %1647 = vmatpush2.xpose.msra.mxu0 0.0
    %1648 = vmatprep.subr.mxu0 0.0
    %1649 = vmatpush2.xpose.msra.mxu0 0.0
    %1650 = vmatprep.subr.mxu0 0.0
    %1651 = vmatpush2.xpose.msra.mxu0 0.0
    %1652 = vmatprep.subr.mxu0 0.0
    %1653 = vmatpush2.xpose.msra.mxu0 0.0
    %1654 = vmatprep.subr.mxu0 0.0
    %1655 = vmatpush2.xpose.msra.mxu0 0.0
    %1656 = vmatprep.subr.mxu0 0.0
    %1657 = vmatpush2.xpose.msra.mxu0 0.0
    %1658 = vmatprep.subr.mxu0 0.0
    %1659 = vmatpush2.xpose.msra.mxu0 0.0
    %1660 = vmatprep.subr.mxu0 0.0
    %1661 = vmatpush2.xpose.msra.mxu0 0.0
    %1662 = vmatprep.subr.mxu0 0.0
    %1663 = vmatpush2.xpose.msra.mxu0 0.0
    %1664 = vmatprep.subr.mxu0 0.0
    %1665 = vmatpush2.xpose.msra.mxu0 0.0
    %1666 = vmatprep.subr.mxu0 0.0
    %1667 = vmatpush2.xpose.msra.mxu0 0.0
    %1668 = vmatprep.subr.mxu0 0.0
    %1669 = vmatpush2.xpose.msra.mxu0 0.0
    %1670 = vmatprep.mubr.f32.mxu0 0.0
    %1671 = vmatmul.mubr.f32.gmra.mxu0 %v1602
    %v1672 = vpop.f32.mrf.mxu0
    %v1673 = vadd.f32 0.0, %v1672
    %v1674 = vpop.f32.mrf.mxu0
    %1675 = vdwg.mxu0
    %v1676 = vsel %vm420, %v1673, -inf
    %1677 = vmax.xlane.f32.xlu0 %v1676
    %v1678 = vpop.xlane.xlu0 %1677
    %v1679 = vsub.f32 %v1673, %v1678
    %v1680 = vmul.f32 %v1679, 1.442695
    %v1681 = vpow.pop %v1680
    %v1682 = vsel %vm420, %v1681, 0.0
    %1683 = vadd.xlane.f32.xlu0 %v1682
    %v1684 = vpop.xlane.xlu0 %1683
    %v1685 = vrcp.pop %v1684
    %v1686 = vmul.f32 %v1681, %v1685
    %s1687 = scalar_lea.vmem [#allocation15], 56
    %1688 = vst.msk [vmem:[%s1687] sm:$0xff] %vm420, %v1686
    %1689 = vrot.lane.b32.xlu0 %v417, 104
    %v1690 = vpop.permute.xlu0 %1689
    %v1693 = vsel %vm420, %v1686, 0
    %1695 = vmatprep.subr.mxu0 0.0
    %1696 = vmatpush1.msra.mxu0 0.0
    %1697 = vmatprep.subr.mxu0 0.0
    %1698 = vmatpush1.msra.mxu0 0.0
    %1699 = vmatprep.subr.mxu0 0.0
    %1700 = vmatpush1.msra.mxu0 0.0
    %1701 = vmatprep.subr.mxu0 0.0
    %1702 = vmatpush1.msra.mxu0 0.0
    %1703 = vmatprep.subr.mxu0 0.0
    %1704 = vmatpush1.msra.mxu0 0.0
    %1705 = vmatprep.subr.mxu0 0.0
    %1706 = vmatpush1.msra.mxu0 0.0
    %1707 = vmatprep.subr.mxu0 0.0
    %1708 = vmatpush1.msra.mxu0 0.0
    %1709 = vmatprep.subr.mxu0 0.0
    %1710 = vmatpush1.msra.mxu0 0.0
    %1711 = vmatprep.subr.mxu0 0.0
    %1712 = vmatpush1.msra.mxu0 0.0
    %1713 = vmatprep.subr.mxu0 0.0
    %1714 = vmatpush1.msra.mxu0 0.0
    %1715 = vmatprep.subr.mxu0 0.0
    %1716 = vmatpush1.msra.mxu0 0.0
    %1717 = vmatprep.subr.mxu0 0.0
    %1718 = vmatpush1.msra.mxu0 0.0
    %1719 = vmatprep.subr.mxu0 0.0
    %1720 = vmatpush1.msra.mxu0 0.0
    %1721 = vmatprep.subr.mxu0 0.0
    %1722 = vmatpush1.msra.mxu0 0.0
    %1723 = vmatprep.subr.mxu0 0.0
    %1724 = vmatpush1.msra.mxu0 0.0
    %1725 = vmatprep.subr.mxu0 0.0
    %1726 = vmatpush1.msra.mxu0 %v1690
    %1727 = vmatprep.subr.mxu0 0.0
    %1728 = vmatpush2.msra.mxu0 0.0
    %1729 = vmatprep.subr.mxu0 0.0
    %1730 = vmatpush2.msra.mxu0 0.0
    %1731 = vmatprep.subr.mxu0 0.0
    %1732 = vmatpush2.msra.mxu0 0.0
    %1733 = vmatprep.subr.mxu0 0.0
    %1734 = vmatpush2.msra.mxu0 0.0
    %1735 = vmatprep.subr.mxu0 0.0
    %1736 = vmatpush2.msra.mxu0 0.0
    %1737 = vmatprep.subr.mxu0 0.0
    %1738 = vmatpush2.msra.mxu0 0.0
    %1739 = vmatprep.subr.mxu0 0.0
    %1740 = vmatpush2.msra.mxu0 0.0
    %1741 = vmatprep.subr.mxu0 0.0
    %1742 = vmatpush2.msra.mxu0 0.0
    %1743 = vmatprep.subr.mxu0 0.0
    %1744 = vmatpush2.msra.mxu0 0.0
    %1745 = vmatprep.subr.mxu0 0.0
    %1746 = vmatpush2.msra.mxu0 0.0
    %1747 = vmatprep.subr.mxu0 0.0
    %1748 = vmatpush2.msra.mxu0 0.0
    %1749 = vmatprep.subr.mxu0 0.0
    %1750 = vmatpush2.msra.mxu0 0.0
    %1751 = vmatprep.subr.mxu0 0.0
    %1752 = vmatpush2.msra.mxu0 0.0
    %1753 = vmatprep.subr.mxu0 0.0
    %1754 = vmatpush2.msra.mxu0 0.0
    %1755 = vmatprep.subr.mxu0 0.0
    %1756 = vmatpush2.msra.mxu0 0.0
    %1757 = vmatprep.subr.mxu0 0.0
    %1758 = vmatpush2.msra.mxu0 0.0
    %1759 = vmatprep.mubr.f32.mxu0 0.0
    %1760 = vmatmul.mubr.f32.gmra.mxu0 %v1693
    %v1761 = vpop.f32.mrf.mxu0
    %v1762 = vadd.f32 0.0, %v1761
    %v1763 = vpop.f32.mrf.mxu0
    %1764 = vdwg.mxu0
    %1766 = vrot.lane.b32.xlu0 %v1428, 8
    %v1767 = vpop.permute.xlu0 %1766
    %1770 = vrot.lane.b32.xlu0 %v1595, 16
    %v1771 = vpop.permute.xlu0 %1770
    %1774 = vrot.lane.b32.xlu0 %v1762, 24
    %v1775 = vpop.permute.xlu0 %1774
    %v1777 = vsel %vm420, %v1260, %v1767
    %v1778 = vsel %vm1097, %v1777, %v1771
    %v1779 = vsel %vm1099, %v1778, %v1775
    %v1780 = vld [vmem:[#allocation13] sm:$0xff]
    %v1781 = vld [vmem:[#allocation13 + $0x8] sm:$0xff]
    %v1782 = vld [vmem:[#allocation13 + $0x10] sm:$0xff]
    %v1783 = vld [vmem:[#allocation13 + $0x18] sm:$0xff]
    %v1784 = vld [vmem:[%s10] sm:$0x1]
    %v1786 = vlaneseq
    %v1787 = vshrl.u32 %v1786, 7
    %v1788 = vsub.s32 0, %v1787
    %v1789 = vrot.slane %v1784, %v1788
    %v1792 = vsel %vm154, %v1100, 0
    %v1795 = vsel %vm154, %v1779, 0
    %1797 = vmatprep.subr.mxu0 0.0
    %1798 = vmatpush1.msra.mxu0 0.0
    %1799 = vmatprep.subr.mxu0 0.0
    %1800 = vmatpush1.msra.mxu0 0.0
    %1801 = vmatprep.subr.mxu0 0.0
    %1802 = vmatpush1.msra.mxu0 0.0
    %1803 = vmatprep.subr.mxu0 0.0
    %1804 = vmatpush1.msra.mxu0 0.0
    %1805 = vmatprep.subr.mxu0 0.0
    %1806 = vmatpush1.msra.mxu0 0.0
    %1807 = vmatprep.subr.mxu0 0.0
    %1808 = vmatpush1.msra.mxu0 0.0
    %1809 = vmatprep.subr.mxu0 0.0
    %1810 = vmatpush1.msra.mxu0 0.0
    %1811 = vmatprep.subr.mxu0 0.0
    %1812 = vmatpush1.msra.mxu0 0.0
    %1813 = vmatprep.subr.mxu0 0.0
    %1814 = vmatpush1.msra.mxu0 0.0
    %1815 = vmatprep.subr.mxu0 0.0
    %1816 = vmatpush1.msra.mxu0 0.0
    %1817 = vmatprep.subr.mxu0 0.0
    %1818 = vmatpush1.msra.mxu0 0.0
    %1819 = vmatprep.subr.mxu0 0.0
    %1820 = vmatpush1.msra.mxu0 0.0
    %1821 = vmatprep.subr.mxu0 0.0
    %1822 = vmatpush1.msra.mxu0 %v1783
    %1823 = vmatprep.subr.mxu0 0.0
    %1824 = vmatpush1.msra.mxu0 %v1782
    %1825 = vmatprep.subr.mxu0 0.0
    %1826 = vmatpush1.msra.mxu0 %v1781
    %1827 = vmatprep.subr.mxu0 0.0
    %1828 = vmatpush1.msra.mxu0 %v1780
    %1829 = vmatprep.subr.mxu0 0.0
    %1830 = vmatpush2.msra.mxu0 0.0
    %1831 = vmatprep.subr.mxu0 0.0
    %1832 = vmatpush2.msra.mxu0 0.0
    %1833 = vmatprep.subr.mxu0 0.0
    %1834 = vmatpush2.msra.mxu0 0.0
    %1835 = vmatprep.subr.mxu0 0.0
    %1836 = vmatpush2.msra.mxu0 0.0
    %1837 = vmatprep.subr.mxu0 0.0
    %1838 = vmatpush2.msra.mxu0 0.0
    %1839 = vmatprep.subr.mxu0 0.0
    %1840 = vmatpush2.msra.mxu0 0.0
    %1841 = vmatprep.subr.mxu0 0.0
    %1842 = vmatpush2.msra.mxu0 0.0
    %1843 = vmatprep.subr.mxu0 0.0
    %1844 = vmatpush2.msra.mxu0 0.0
    %1845 = vmatprep.subr.mxu0 0.0
    %1846 = vmatpush2.msra.mxu0 0.0
    %1847 = vmatprep.subr.mxu0 0.0
    %1848 = vmatpush2.msra.mxu0 0.0
    %1849 = vmatprep.subr.mxu0 0.0
    %1850 = vmatpush2.msra.mxu0 0.0
    %1851 = vmatprep.subr.mxu0 0.0
    %1852 = vmatpush2.msra.mxu0 0.0
    %1853 = vmatprep.subr.mxu0 0.0
    %1854 = vmatpush2.msra.mxu0 0.0
    %1855 = vmatprep.subr.mxu0 0.0
    %1856 = vmatpush2.msra.mxu0 0.0
    %1857 = vmatprep.subr.mxu0 0.0
    %1858 = vmatpush2.msra.mxu0 0.0
    %1859 = vmatprep.subr.mxu0 0.0
    %1860 = vmatpush2.msra.mxu0 0.0
    %1861 = vmatprep.mubr.f32.mxu0 0.0
    %1862 = vmatmul.mubr.f32.gmra.mxu0 %v1792
    %v1863 = vpop.f32.mrf.mxu0
    %v1864 = vadd.f32 %v1789, %v1863
    %v1865 = vpop.f32.mrf.mxu0
    %1866 = vmatprep.mubr.f32.mxu0 0.0
    %1867 = vmatmul.mubr.f32.gmra.mxu0 %v1795
    %v1868 = vpop.f32.mrf.mxu0
    %v1869 = vadd.f32 %v1789, %v1868
    %v1870 = vpop.f32.mrf.mxu0
    %1871 = vdwg.mxu0
    %1872 = vst.msk [vmem:[#allocation14] sm:$0xff] %vm154, %v1864
    %1873 = vst.msk [vmem:[#allocation14 + $0x8] sm:$0xff] %vm154, %v1869
    // Predicated region
    $region74: #{tpu_custom_call.1} parent=1 // pred_check
      _
    $region75: #{tpu_custom_call.1} parent=1 // pred_check_branch
      %1875 = sbr.rel (0) target = $region77
    $region76: #{tpu_custom_call.1} parent=1 // pred_region
      %s1877 = ssub.s32 256, 256
      %1878 = vsyncadd [#allocation4], %s1877
      %s1879 = sshll.u32 [#allocation14], 4
      %s1880 = int_to_ptr.vmem [resolvable:$true] %s1879
      %1885 = dma.vmem_to_hbm [thread:$0]  %s1880, 256, %s11, [#allocation4], 128, 128, 8
    $region77: #{tpu_custom_call.1} parent=1 // pred_fallthru
      _
    // Predicated region
    $region78: #{tpu_custom_call.1} parent=1 // pred_check
      _
    $region79: #{tpu_custom_call.1} parent=1 // pred_check_branch
      %1887 = sbr.rel (0) target = $region81
    $region80: #{tpu_custom_call.1} parent=1 // pred_region
      %s1889 = ssub.s32 1024, 1024
      %1890 = vsyncadd [#allocation16], %s1889
      %s1891 = sshll.u32 [#allocation15], 4
      %s1892 = int_to_ptr.vmem [resolvable:$true] %s1891
      %1897 = dma.vmem_to_hbm [thread:$0]  %s1892, 1024, %s12, [#allocation16], 128, 128, 8
    $region81: #{tpu_custom_call.1} parent=1 // pred_fallthru
      _
    // Predicated region
    $region82: #{tpu_custom_call.1} parent=1 // pred_check
      _
    $region83: #{tpu_custom_call.1} parent=1 // pred_check_branch
      %1899 = sbr.rel (0) target = $region85
    $region84: #{tpu_custom_call.1} parent=1 // pred_region
      %1900 = dma.done [#allocation4], 256
    $region85: #{tpu_custom_call.1} parent=1 // pred_fallthru
      _
    // Predicated region
    $region86: #{tpu_custom_call.1} parent=1 // pred_check
      _
    $region87: #{tpu_custom_call.1} parent=1 // pred_check_branch
      %1902 = sbr.rel (0) target = $region89
    $region88: #{tpu_custom_call.1} parent=1 // pred_region
      %1903 = dma.done [#allocation16], 1024
    $region89: #{tpu_custom_call.1} parent=1 // pred_fallthru
      _
    %1904 = vsyncpa [#allocation3], 1
    %1905 = vsyncpa [#allocation6], 1
    %1906 = vsyncpa [#allocation9], 1
    %1907 = vsyncpa [#allocation12], 1
    %1908 = vsyncpa [#allocation4], 1
    %1909 = vsyncpa [#allocation16], 1

</llo_original>
